<compile_context>
chip_gen: v6e
topology: v6e:2x2x1
jax: 0.10.0
libtpu: 0.0.40
codegen_flags: <defaults>
</compile_context>

<pallas_src>
import math
import numpy as np
import jax
import jax.numpy as jnp
from jax import lax
from jax.experimental import pallas as pl
from jax.experimental.pallas import tpu as pltpu

# ----------------------------- model config ---------------------------------
VOCAB_SIZE = 50
MAX_LEN = 16          # == bert.embeddings.position_embeddings.num_embeddings
HIDDEN = 32           # real hidden size
FFN = 64              # real FFN size
HP = 128              # lane-padded hidden size
FP = 128              # lane-padded FFN size
N_LAYERS = 2
LN_EPS = 1e-5
SCALE = 1.0 / math.sqrt(HIDDEN)
CLS_ID, PAD_ID, SEP_ID = 0, 1, 2   # xlm-roberta style <s>, <pad>, </s>


# ----------------------------- fused Pallas kernel ---------------------------
def _masked_layernorm(h, g, b):
    """LayerNorm over the first HIDDEN lanes of an HP-wide, zero-padded array.

    Padding lanes of h are exactly zero, so sum / sum-of-squares over all HP
    lanes equal the sums over the HIDDEN real lanes.  gamma/beta are
    zero-padded, so padding lanes of the output stay exactly zero.
    """
    s1 = jnp.sum(h, axis=-1, keepdims=True)
    s2 = jnp.sum(h * h, axis=-1, keepdims=True)
    mu = s1 * (1.0 / HIDDEN)
    var = s2 * (1.0 / HIDDEN) - mu * mu
    inv = lax.rsqrt(var + LN_EPS)
    return (h - mu) * inv * g + b


def _encoder_kernel(idx_ref,                                  # scalar prefetch (SMEM)
                    emb_ref, bias_ref, eg_ref, eb_ref,        # inputs
                    wqkv_ref, bqkv_ref, wo_ref, bo_ref,
                    ln1g_ref, ln1b_ref, w1_ref, b1_ref,
                    w2_ref, b2_ref, ln2g_ref, ln2b_ref,
                    out_ref,                                  # output
                    x_scratch):                               # VMEM scratch
    layer = pl.program_id(0)
    n_layers = pl.num_programs(0)
    B, S = bias_ref.shape
    rows = x_scratch.shape[0]                                 # B * S (static)

    # ---- embedding LayerNorm (only on the first grid step) ----
    @pl.when(layer == 0)
    def _():
        x_scratch[...] = _masked_layernorm(emb_ref[...], eg_ref[...], eb_ref[...])

    x = x_scratch[...]                                        # (rows, HP) fp32
    xb = x.astype(jnp.bfloat16)

    # ---- fused QKV projection (lane-dense 3*HP output) ----
    qkv = jnp.dot(xb, wqkv_ref[0], preferred_element_type=jnp.float32) + bqkv_ref[0]
    q = qkv[:, 0 * HP:1 * HP].reshape(B, S, HP).astype(jnp.bfloat16)
    k = qkv[:, 1 * HP:2 * HP].reshape(B, S, HP).astype(jnp.bfloat16)
    v = qkv[:, 2 * HP:3 * HP].reshape(B, S, HP).astype(jnp.bfloat16)

    # ---- self-attention (softmax / mask math kept in fp32) ----
    s = jnp.einsum('bqd,bkd->bqk', q, k,
                   preferred_element_type=jnp.float32) * SCALE
    s = s + bias_ref[...][:, None, :]                         # -1e9 on padded keys
    m = jnp.max(s, axis=-1, keepdims=True)
    p = jnp.exp(s - m)
    p = p * pl.reciprocal(jnp.sum(p, axis=-1, keepdims=True), approx=True)
    ctx = jnp.einsum('bqk,bkd->bqd', p.astype(jnp.bfloat16), v,
                     preferred_element_type=jnp.float32).reshape(rows, HP)

    attn = jnp.dot(ctx.astype(jnp.bfloat16), wo_ref[0],
                   preferred_element_type=jnp.float32) + bo_ref[0]
    h1 = _masked_layernorm(attn + x, ln1g_ref[0], ln1b_ref[0])

    # ---- FFN ----
    ff = jnp.dot(h1.astype(jnp.bfloat16), w1_ref[0],
                 preferred_element_type=jnp.float32) + b1_ref[0]
    ff = jax.nn.gelu(ff)
    ff = jnp.dot(ff.astype(jnp.bfloat16), w2_ref[0],
                 preferred_element_type=jnp.float32) + b2_ref[0]
    h2 = _masked_layernorm(ff + h1, ln2g_ref[0], ln2b_ref[0])

    x_scratch[...] = h2

    # ---- final step: fold masked_select(end_mask) into the output write ----
    @pl.when(layer == n_layers - 1)
    def _():
        @pl.loop(0, rows)
        def _(i):
            out_ref[pl.ds(i, 1), :] = x_scratch[pl.ds(idx_ref[i], 1), :]


def _fused_encoder(flat_idx, emb, bias, packed):
    rows = emb.shape[0]
    B, S = bias.shape
    grid_spec = pltpu.PrefetchScalarGridSpec(
        num_scalar_prefetch=1,
        grid=(N_LAYERS,),
        in_specs=[
            pl.BlockSpec((rows, HP), lambda l, idx: (0, 0)),          # emb
            pl.BlockSpec((B, S), lambda l, idx: (0, 0)),              # mask bias
            pl.BlockSpec((1, HP), lambda l, idx: (0, 0)),             # emb_ln_g
            pl.BlockSpec((1, HP), lambda l, idx: (0, 0)),             # emb_ln_b
            pl.BlockSpec((1, HP, 3 * HP), lambda l, idx: (l, 0, 0)),  # w_qkv
            pl.BlockSpec((1, 1, 3 * HP), lambda l, idx: (l, 0, 0)),   # b_qkv
            pl.BlockSpec((1, HP, HP), lambda l, idx: (l, 0, 0)),      # w_o
            pl.BlockSpec((1, 1, HP), lambda l, idx: (l, 0, 0)),       # b_o
            pl.BlockSpec((1, 1, HP), lambda l, idx: (l, 0, 0)),       # ln1_g
            pl.BlockSpec((1, 1, HP), lambda l, idx: (l, 0, 0)),       # ln1_b
            pl.BlockSpec((1, HP, FP), lambda l, idx: (l, 0, 0)),      # w1
            pl.BlockSpec((1, 1, FP), lambda l, idx: (l, 0, 0)),       # b1
            pl.BlockSpec((1, FP, HP), lambda l, idx: (l, 0, 0)),      # w2
            pl.BlockSpec((1, 1, HP), lambda l, idx: (l, 0, 0)),       # b2
            pl.BlockSpec((1, 1, HP), lambda l, idx: (l, 0, 0)),       # ln2_g
            pl.BlockSpec((1, 1, HP), lambda l, idx: (l, 0, 0)),       # ln2_b
        ],
        out_specs=pl.BlockSpec((rows, HP), lambda l, idx: (0, 0)),
        scratch_shapes=[pltpu.VMEM((rows, HP), jnp.float32)],
    )
    return pl.pallas_call(
        _encoder_kernel,
        out_shape=jax.ShapeDtypeStruct((rows, HP), jnp.float32),
        grid_spec=grid_spec,
        compiler_params=pltpu.CompilerParams(
            dimension_semantics=("arbitrary",)),
    )(flat_idx, emb, bias,
      packed['emb_ln_g'], packed['emb_ln_b'],
      packed['w_qkv'], packed['b_qkv'], packed['w_o'], packed['b_o'],
      packed['ln1_g'], packed['ln1_b'], packed['w1'], packed['b1'],
      packed['w2'], packed['b2'], packed['ln2_g'], packed['ln2_b'])


@jax.jit
def _encoder_forward(flat_idx, input_ids, input_mask, packed):
    """Embedding lookup (host-side XLA gather) + fused Pallas encoder."""
    B, S = input_ids.shape
    rows = B * S
    emb = packed['word_emb'][input_ids] + packed['pos_emb'][None, :S, :]
    emb = emb.reshape(rows, HP).astype(jnp.float32)
    bias = (input_mask.astype(jnp.float32) - 1.0) * 1e9        # 0 keep / -1e9 mask
    return _fused_encoder(flat_idx, emb, bias, packed)         # (rows, HP)


# ----------------------------- synthetic BERT params -------------------------
def init_params(key):
    keys = jax.random.split(key, 2 + N_LAYERS)
    params = {
        'word_emb': jax.random.normal(keys[0], (VOCAB_SIZE, HIDDEN), jnp.float32) * 0.02,
        'pos_emb': jax.random.normal(keys[1], (MAX_LEN, HIDDEN), jnp.float32) * 0.02,
        'emb_ln_g': jnp.ones((HIDDEN,), jnp.float32),
        'emb_ln_b': jnp.zeros((HIDDEN,), jnp.float32),
        'layers': [],
    }
    for l in range(N_LAYERS):
        k = jax.random.split(keys[2 + l], 6)
        params['layers'].append(dict(
            wq=jax.random.normal(k[0], (HIDDEN, HIDDEN), jnp.float32) * 0.02,
            bq=jnp.zeros((HIDDEN,), jnp.float32),
            wk=jax.random.normal(k[1], (HIDDEN, HIDDEN), jnp.float32) * 0.02,
            bk=jnp.zeros((HIDDEN,), jnp.float32),
            wv=jax.random.normal(k[2], (HIDDEN, HIDDEN), jnp.float32) * 0.02,
            bv=jnp.zeros((HIDDEN,), jnp.float32),
            wo=jax.random.normal(k[3], (HIDDEN, HIDDEN), jnp.float32) * 0.02,
            bo=jnp.zeros((HIDDEN,), jnp.float32),
            ln1_g=jnp.ones((HIDDEN,), jnp.float32),
            ln1_b=jnp.zeros((HIDDEN,), jnp.float32),
            w1=jax.random.normal(k[4], (HIDDEN, FFN), jnp.float32) * 0.02,
            b1=jnp.zeros((FFN,), jnp.float32),
            w2=jax.random.normal(k[5], (FFN, HIDDEN), jnp.float32) * 0.02,
            b2=jnp.zeros((HIDDEN,), jnp.float32),
            ln2_g=jnp.ones((HIDDEN,), jnp.float32),
            ln2_b=jnp.zeros((HIDDEN,), jnp.float32),
        ))
    return params


def pack_params(params):
    """Zero-pad to lane-dense (128-wide) layouts, fuse QKV, stack layers."""
    def pad2(x, r, c):
        return jnp.pad(x, ((0, r - x.shape[0]), (0, c - x.shape[1])))

    def pad_vec(x, c):
        return jnp.pad(x, (0, c - x.shape[0])).reshape(1, c)

    packed = {
        'word_emb': pad2(params['word_emb'], VOCAB_SIZE, HP),
        'pos_emb': pad2(params['pos_emb'], MAX_LEN, HP),
        'emb_ln_g': pad_vec(params['emb_ln_g'], HP),
        'emb_ln_b': pad_vec(params['emb_ln_b'], HP),
    }
    w_qkv, b_qkv, w_o, b_o = [], [], [], []
    ln1_g, ln1_b, w1, b1, w2, b2, ln2_g, ln2_b = ([] for _ in range(8))
    for p in params['layers']:
        w_qkv.append(jnp.concatenate(
            [pad2(p['wq'], HP, HP), pad2(p['wk'], HP, HP), pad2(p['wv'], HP, HP)],
            axis=1))
        b_qkv.append(jnp.concatenate(
            [pad_vec(p['bq'], HP), pad_vec(p['bk'], HP), pad_vec(p['bv'], HP)],
            axis=1))
        w_o.append(pad2(p['wo'], HP, HP))
        b_o.append(pad_vec(p['bo'], HP))
        ln1_g.append(pad_vec(p['ln1_g'], HP))
        ln1_b.append(pad_vec(p['ln1_b'], HP))
        w1.append(pad2(p['w1'], HP, FP))
        b1.append(pad_vec(p['b1'], FP))
        w2.append(pad2(p['w2'], FP, HP))
        b2.append(pad_vec(p['b2'], HP))
        ln2_g.append(pad_vec(p['ln2_g'], HP))
        ln2_b.append(pad_vec(p['ln2_b'], HP))

    packed.update(
        w_qkv=jnp.stack(w_qkv).astype(jnp.bfloat16),   # bf16 MXU feed
        b_qkv=jnp.stack(b_qkv),
        w_o=jnp.stack(w_o).astype(jnp.bfloat16),
        b_o=jnp.stack(b_o),
        ln1_g=jnp.stack(ln1_g), ln1_b=jnp.stack(ln1_b),
        w1=jnp.stack(w1).astype(jnp.bfloat16), b1=jnp.stack(b1),
        w2=jnp.stack(w2).astype(jnp.bfloat16), b2=jnp.stack(b2),
        ln2_g=jnp.stack(ln2_g), ln2_b=jnp.stack(ln2_b),
    )
    return packed


# ----------------------------- synthetic tokenizer ---------------------------
def _tokenize_word(word):
    """Deterministic stand-in for bert_tokenizer.tokenize(word)."""
    n_sub = 1 + (len(word) % 2)
    base = sum(ord(c) for c in word)
    ids = [((base * 7 + j * 13) % (VOCAB_SIZE - 3)) + 3 for j in range(n_sub)]
    return ids


# ----------------------------- WordLevelBert ---------------------------------
class WordLevelBertPallas:
    """Runs the (synthetic) BERT on sentences but only keeps the last subword
    embedding for each word — single fused Pallas TPU kernel implementation."""

    def __init__(self, key):
        self.packed = pack_params(init_params(key))
        self.max_len = MAX_LEN

    def forward(self, sentences, include_clssep=True):
        batch_size = 128
        ann_full = None
        for i in range(0, len(sentences), batch_size):
            ann = self.annotate(sentences[i:i + batch_size],
                                include_clssep=include_clssep)
            if ann_full is None:
                ann_full = ann
            else:
                ann_full = jnp.concatenate((ann_full, ann), axis=0)
        return ann_full

    def annotate(self, sentences, include_clssep=True):
        B = len(sentences)
        S = self.max_len                                    # fixed S: no recompiles
        if include_clssep:
            packed_len = sum(len(s) + 2 for s in sentences)
        else:
            packed_len = sum(len(s) for s in sentences)

        all_input_ids = np.zeros((B, S), dtype=np.int32)
        all_input_mask = np.zeros((B, S), dtype=np.int32)
        all_end_mask = np.zeros((B, S), dtype=np.int32)
        for s_num, sentence in enumerate(sentences):
            ids = [CLS_ID]                                  # '<s>'
            end_mask = [int(include_clssep)]
            for word in sentence:
                word_tokens = _tokenize_word(word)
                assert len(word_tokens) > 0
                for _ in range(len(word_tokens)):
                    end_mask.append(0)
                end_mask[-1] = 1
                ids.extend(word_tokens)
            ids.append(SEP_ID)                              # '</s>'
            end_mask.append(int(include_clssep))
            assert len(ids) <= S
            all_input_ids[s_num, :len(ids)] = ids
            all_input_mask[s_num, :len(ids)] = 1
            all_end_mask[s_num, :len(end_mask)] = end_mask

        # masked_select(end_mask) indices, row-major (b, s) order; padded with 0
        rows = B * S
        flat_idx = np.zeros((rows,), dtype=np.int32)
        nz = np.nonzero(all_end_mask.reshape(-1))[0].astype(np.int32)
        flat_idx[:nz.shape[0]] = nz

        feats = _encoder_forward(jnp.asarray(flat_idx),
                                 jnp.asarray(all_input_ids),
                                 jnp.asarray(all_input_mask),
                                 self.packed)               # (B*S, HP) gathered
        features_packed = feats[:packed_len, :HIDDEN]
        assert features_packed.shape[0] == packed_len, \
            'Features: {}, Packed len: {}'.format(features_packed.shape[0], packed_len)
        return features_packed


# ----------------------------- main ------------------------------------------
if __name__ == "__main__":
    key = jax.random.PRNGKey(0)
    model = WordLevelBertPallas(key)

    sentences = [["hello", "world", "align"],
                 ["kernel", "tpu"]]

    out = model.forward(sentences, include_clssep=True)
    out = jax.block_until_ready(out)

    expected_packed_len = sum(len(s) + 2 for s in sentences)
    assert out.shape == (expected_packed_len, HIDDEN), out.shape
    assert bool(jnp.all(jnp.isfinite(out)))
    print("KERNEL_OK")
</pallas_src>

<mosaic_0001>
module attributes {stable_mosaic.version = 11 : i64} {
  func.func @_encoder_kernel(%arg0: i32, %arg1: memref<32xi32, #tpu.memory_space<smem>>, %arg2: memref<32x128xf32, #tpu.memory_space<vmem>>, %arg3: memref<2x16xf32, #tpu.memory_space<vmem>>, %arg4: memref<1x128xf32, #tpu.memory_space<vmem>>, %arg5: memref<1x128xf32, #tpu.memory_space<vmem>>, %arg6: memref<1x128x384xbf16, #tpu.memory_space<vmem>>, %arg7: memref<1x1x384xf32, #tpu.memory_space<vmem>>, %arg8: memref<1x128x128xbf16, #tpu.memory_space<vmem>>, %arg9: memref<1x1x128xf32, #tpu.memory_space<vmem>>, %arg10: memref<1x1x128xf32, #tpu.memory_space<vmem>>, %arg11: memref<1x1x128xf32, #tpu.memory_space<vmem>>, %arg12: memref<1x128x128xbf16, #tpu.memory_space<vmem>>, %arg13: memref<1x1x128xf32, #tpu.memory_space<vmem>>, %arg14: memref<1x128x128xbf16, #tpu.memory_space<vmem>>, %arg15: memref<1x1x128xf32, #tpu.memory_space<vmem>>, %arg16: memref<1x1x128xf32, #tpu.memory_space<vmem>>, %arg17: memref<1x1x128xf32, #tpu.memory_space<vmem>>, %arg18: memref<32x128xf32, #tpu.memory_space<vmem>>, %arg19: memref<32x128xf32, #tpu.memory_space<vmem>>) attributes {dimension_semantics = [#tpu.dimension_semantics<arbitrary>], iteration_bounds = array<i64: 2>, scalar_prefetch = 1 : i64, scratch_operands = 1 : i64, tpu.core_type = #tpu.core_type<tc>, window_params = [{pipeline_mode = #tpu.pipeline_mode<synchronous>, transform_indices = @transform_0, window_bounds = array<i64: 32, 128>}, {pipeline_mode = #tpu.pipeline_mode<synchronous>, transform_indices = @transform_1, window_bounds = array<i64: 2, 16>}, {pipeline_mode = #tpu.pipeline_mode<synchronous>, transform_indices = @transform_2, window_bounds = array<i64: 1, 128>}, {pipeline_mode = #tpu.pipeline_mode<synchronous>, transform_indices = @transform_3, window_bounds = array<i64: 1, 128>}, {transform_indices = @transform_4, window_bounds = array<i64: 1, 128, 384>}, {transform_indices = @transform_5, window_bounds = array<i64: 1, 1, 384>}, {transform_indices = @transform_6, window_bounds = array<i64: 1, 128, 128>}, {transform_indices = @transform_7, window_bounds = array<i64: 1, 1, 128>}, {transform_indices = @transform_8, window_bounds = array<i64: 1, 1, 128>}, {transform_indices = @transform_9, window_bounds = array<i64: 1, 1, 128>}, {transform_indices = @transform_10, window_bounds = array<i64: 1, 128, 128>}, {transform_indices = @transform_11, window_bounds = array<i64: 1, 1, 128>}, {transform_indices = @transform_12, window_bounds = array<i64: 1, 128, 128>}, {transform_indices = @transform_13, window_bounds = array<i64: 1, 1, 128>}, {transform_indices = @transform_14, window_bounds = array<i64: 1, 1, 128>}, {transform_indices = @transform_15, window_bounds = array<i64: 1, 1, 128>}, {pipeline_mode = #tpu.pipeline_mode<synchronous>, transform_indices = @transform_16, window_bounds = array<i64: 32, 128>}]} {
    %c0_i32 = arith.constant 0 : i32
    %0 = arith.cmpi eq, %arg0, %c0_i32 : i32
    %1 = arith.extui %0 : i1 to i32
    %c0_i32_0 = arith.constant 0 : i32
    %2 = arith.cmpi ne, %1, %c0_i32_0 : i32
    scf.if %2 {
      %c0_65 = arith.constant 0 : index
      %c0_66 = arith.constant 0 : index
      %136 = vector.load %arg2[%c0_65, %c0_66] : memref<32x128xf32, #tpu.memory_space<vmem>>, vector<32x128xf32>
      %c0_67 = arith.constant 0 : index
      %c0_68 = arith.constant 0 : index
      %137 = vector.load %arg4[%c0_67, %c0_68] : memref<1x128xf32, #tpu.memory_space<vmem>>, vector<1x128xf32>
      %c0_69 = arith.constant 0 : index
      %c0_70 = arith.constant 0 : index
      %138 = vector.load %arg5[%c0_69, %c0_70] : memref<1x128xf32, #tpu.memory_space<vmem>>, vector<1x128xf32>
      %cst_71 = arith.constant dense<0.000000e+00> : vector<32xf32>
      %139 = vector.multi_reduction <add>, %136, %cst_71 [1] : vector<32x128xf32> to vector<32xf32>
      %140 = vector.shape_cast %139 : vector<32xf32> to vector<32x1xf32>
      %141 = arith.mulf %136, %136 : vector<32x128xf32>
      %cst_72 = arith.constant dense<0.000000e+00> : vector<32xf32>
      %142 = vector.multi_reduction <add>, %141, %cst_72 [1] : vector<32x128xf32> to vector<32xf32>
      %143 = vector.shape_cast %142 : vector<32xf32> to vector<32x1xf32>
      %cst_73 = arith.constant 3.125000e-02 : f32
      %144 = vector.broadcast %cst_73 : f32 to vector<32x1xf32>
      %145 = arith.mulf %140, %144 : vector<32x1xf32>
      %cst_74 = arith.constant 3.125000e-02 : f32
      %146 = vector.broadcast %cst_74 : f32 to vector<32x1xf32>
      %147 = arith.mulf %143, %146 : vector<32x1xf32>
      %148 = arith.mulf %145, %145 : vector<32x1xf32>
      %149 = arith.subf %147, %148 : vector<32x1xf32>
      %cst_75 = arith.constant 9.99999974E-6 : f32
      %150 = vector.broadcast %cst_75 : f32 to vector<32x1xf32>
      %151 = arith.addf %149, %150 : vector<32x1xf32>
      %152 = math.rsqrt %151 : vector<32x1xf32>
      %153 = vector.broadcast %145 : vector<32x1xf32> to vector<32x128xf32>
      %154 = arith.subf %136, %153 : vector<32x128xf32>
      %155 = vector.broadcast %152 : vector<32x1xf32> to vector<32x128xf32>
      %156 = arith.mulf %154, %155 : vector<32x128xf32>
      %157 = vector.broadcast %137 : vector<1x128xf32> to vector<32x128xf32>
      %158 = arith.mulf %156, %157 : vector<32x128xf32>
      %159 = vector.broadcast %138 : vector<1x128xf32> to vector<32x128xf32>
      %160 = arith.addf %158, %159 : vector<32x128xf32>
      %c0_76 = arith.constant 0 : index
      %c0_77 = arith.constant 0 : index
      %161 = vector.load %arg19[%c0_76, %c0_77] : memref<32x128xf32, #tpu.memory_space<vmem>>, vector<32x128xf32>
      tpu.vector_store %arg19[%c0_76, %c0_77], %160 {strides = array<i32>} : memref<32x128xf32, #tpu.memory_space<vmem>>, vector<32x128xf32>,
    } else {
    }
    %c0 = arith.constant 0 : index
    %c0_1 = arith.constant 0 : index
    %3 = vector.load %arg19[%c0, %c0_1] : memref<32x128xf32, #tpu.memory_space<vmem>>, vector<32x128xf32>
    %4 = arith.truncf %3 : vector<32x128xf32> to vector<32x128xbf16>
    %c0_2 = arith.constant 0 : index
    %c0_3 = arith.constant 0 : index
    %c0_4 = arith.constant 0 : index
    %5 = vector.load %arg6[%c0_2, %c0_3, %c0_4] : memref<1x128x384xbf16, #tpu.memory_space<vmem>>, vector<1x128x384xbf16>
    %6 = vector.shape_cast %5 : vector<1x128x384xbf16> to vector<128x384xbf16>
    %cst = arith.constant dense<0.000000e+00> : vector<32x384xf32>
    %7 = tpu.matmul %4, %6, %cst {dimension_numbers = #tpu.dot_dimension_numbers<[1], [0], [0], [1], [0, 0, 1, 1], [], []>} : vector<32x128xbf16>, vector<128x384xbf16>, vector<32x384xf32> -> vector<32x384xf32>
    %c0_5 = arith.constant 0 : index
    %c0_6 = arith.constant 0 : index
    %c0_7 = arith.constant 0 : index
    %8 = vector.load %arg7[%c0_5, %c0_6, %c0_7] : memref<1x1x384xf32, #tpu.memory_space<vmem>>, vector<1x1x384xf32>
    %9 = vector.shape_cast %8 : vector<1x1x384xf32> to vector<1x384xf32>
    %10 = vector.broadcast %9 : vector<1x384xf32> to vector<32x384xf32>
    %11 = arith.addf %7, %10 : vector<32x384xf32>
    %12 = vector.extract_strided_slice %11 {offsets = [0, 0], sizes = [32, 128], strides = [1, 1]} : vector<32x384xf32> to vector<32x128xf32>
    %13 = vector.shape_cast %12 : vector<32x128xf32> to vector<2x16x128xf32>
    %14 = arith.truncf %13 : vector<2x16x128xf32> to vector<2x16x128xbf16>
    %15 = vector.extract_strided_slice %11 {offsets = [0, 128], sizes = [32, 128], strides = [1, 1]} : vector<32x384xf32> to vector<32x128xf32>
    %16 = vector.shape_cast %15 : vector<32x128xf32> to vector<2x16x128xf32>
    %17 = arith.truncf %16 : vector<2x16x128xf32> to vector<2x16x128xbf16>
    %18 = vector.extract_strided_slice %11 {offsets = [0, 256], sizes = [32, 128], strides = [1, 1]} : vector<32x384xf32> to vector<32x128xf32>
    %19 = vector.shape_cast %18 : vector<32x128xf32> to vector<2x16x128xf32>
    %20 = arith.truncf %19 : vector<2x16x128xf32> to vector<2x16x128xbf16>
    "tpu.trace_start"() <{level = 10 : i32, message = "bqd,bkd->bqk"}> : () -> ()
    %cst_8 = arith.constant dense<0.000000e+00> : vector<2x16x16xf32>
    %21 = tpu.matmul %14, %17, %cst_8 {dimension_numbers = #tpu.dot_dimension_numbers<[2], [2], [1], [1], [0, 0, 0, 1, 1, 1], [0], [0]>} : vector<2x16x128xbf16>, vector<2x16x128xbf16>, vector<2x16x16xf32> -> vector<2x16x16xf32>
    "tpu.trace_stop"() : () -> ()
    %cst_9 = arith.constant 0.176776692 : f32
    %22 = vector.broadcast %cst_9 : f32 to vector<2x16x16xf32>
    %23 = arith.mulf %21, %22 : vector<2x16x16xf32>
    %c0_10 = arith.constant 0 : index
    %c0_11 = arith.constant 0 : index
    %24 = vector.load %arg3[%c0_10, %c0_11] : memref<2x16xf32, #tpu.memory_space<vmem>>, vector<2x16xf32>
    %25 = vector.shape_cast %24 : vector<2x16xf32> to vector<2x1x16xf32>
    %26 = vector.broadcast %25 : vector<2x1x16xf32> to vector<2x16x16xf32>
    %27 = arith.addf %23, %26 : vector<2x16x16xf32>
    %cst_12 = arith.constant dense<0xFF800000> : vector<2x16xf32>
    %28 = vector.multi_reduction <maximumf>, %27, %cst_12 [2] : vector<2x16x16xf32> to vector<2x16xf32>
    %29 = vector.shape_cast %28 : vector<2x16xf32> to vector<2x16x1xf32>
    %30 = vector.broadcast %29 : vector<2x16x1xf32> to vector<2x16x16xf32>
    %31 = arith.subf %27, %30 : vector<2x16x16xf32>
    %32 = math.exp %31 : vector<2x16x16xf32>
    %cst_13 = arith.constant dense<0.000000e+00> : vector<2x16xf32>
    %33 = vector.multi_reduction <add>, %32, %cst_13 [2] : vector<2x16x16xf32> to vector<2x16xf32>
    %34 = vector.shape_cast %33 : vector<2x16xf32> to vector<2x16x1xf32>
    %35 = tpu.reciprocal %34 {approx = true} : vector<2x16x1xf32> -> vector<2x16x1xf32>
    %36 = vector.broadcast %35 : vector<2x16x1xf32> to vector<2x16x16xf32>
    %37 = arith.mulf %32, %36 : vector<2x16x16xf32>
    %38 = arith.truncf %37 : vector<2x16x16xf32> to vector<2x16x16xbf16>
    "tpu.trace_start"() <{level = 10 : i32, message = "bqk,bkd->bqd"}> : () -> ()
    %cst_14 = arith.constant dense<0.000000e+00> : vector<2x16x128xf32>
    %39 = tpu.matmul %38, %20, %cst_14 {dimension_numbers = #tpu.dot_dimension_numbers<[2], [1], [1], [2], [0, 0, 0, 1, 1, 2], [0], [0]>} : vector<2x16x16xbf16>, vector<2x16x128xbf16>, vector<2x16x128xf32> -> vector<2x16x128xf32>
    "tpu.trace_stop"() : () -> ()
    %40 = vector.shape_cast %39 : vector<2x16x128xf32> to vector<32x128xf32>
    %41 = arith.truncf %40 : vector<32x128xf32> to vector<32x128xbf16>
    %c0_15 = arith.constant 0 : index
    %c0_16 = arith.constant 0 : index
    %c0_17 = arith.constant 0 : index
    %42 = vector.load %arg8[%c0_15, %c0_16, %c0_17] : memref<1x128x128xbf16, #tpu.memory_space<vmem>>, vector<1x128x128xbf16>
    %43 = vector.shape_cast %42 : vector<1x128x128xbf16> to vector<128x128xbf16>
    %cst_18 = arith.constant dense<0.000000e+00> : vector<32x128xf32>
    %44 = tpu.matmul %41, %43, %cst_18 {dimension_numbers = #tpu.dot_dimension_numbers<[1], [0], [0], [1], [0, 0, 1, 1], [], []>} : vector<32x128xbf16>, vector<128x128xbf16>, vector<32x128xf32> -> vector<32x128xf32>
    %c0_19 = arith.constant 0 : index
    %c0_20 = arith.constant 0 : index
    %c0_21 = arith.constant 0 : index
    %45 = vector.load %arg9[%c0_19, %c0_20, %c0_21] : memref<1x1x128xf32, #tpu.memory_space<vmem>>, vector<1x1x128xf32>
    %46 = vector.shape_cast %45 : vector<1x1x128xf32> to vector<1x128xf32>
    %47 = vector.broadcast %46 : vector<1x128xf32> to vector<32x128xf32>
    %48 = arith.addf %44, %47 : vector<32x128xf32>
    %49 = arith.addf %48, %3 : vector<32x128xf32>
    %c0_22 = arith.constant 0 : index
    %c0_23 = arith.constant 0 : index
    %c0_24 = arith.constant 0 : index
    %50 = vector.load %arg10[%c0_22, %c0_23, %c0_24] : memref<1x1x128xf32, #tpu.memory_space<vmem>>, vector<1x1x128xf32>
    %51 = vector.shape_cast %50 : vector<1x1x128xf32> to vector<1x128xf32>
    %c0_25 = arith.constant 0 : index
    %c0_26 = arith.constant 0 : index
    %c0_27 = arith.constant 0 : index
    %52 = vector.load %arg11[%c0_25, %c0_26, %c0_27] : memref<1x1x128xf32, #tpu.memory_space<vmem>>, vector<1x1x128xf32>
    %53 = vector.shape_cast %52 : vector<1x1x128xf32> to vector<1x128xf32>
    %cst_28 = arith.constant dense<0.000000e+00> : vector<32xf32>
    %54 = vector.multi_reduction <add>, %49, %cst_28 [1] : vector<32x128xf32> to vector<32xf32>
    %55 = vector.shape_cast %54 : vector<32xf32> to vector<32x1xf32>
    %56 = arith.mulf %49, %49 : vector<32x128xf32>
    %cst_29 = arith.constant dense<0.000000e+00> : vector<32xf32>
    %57 = vector.multi_reduction <add>, %56, %cst_29 [1] : vector<32x128xf32> to vector<32xf32>
    %58 = vector.shape_cast %57 : vector<32xf32> to vector<32x1xf32>
    %cst_30 = arith.constant 3.125000e-02 : f32
    %59 = vector.broadcast %cst_30 : f32 to vector<32x1xf32>
    %60 = arith.mulf %55, %59 : vector<32x1xf32>
    %cst_31 = arith.constant 3.125000e-02 : f32
    %61 = vector.broadcast %cst_31 : f32 to vector<32x1xf32>
    %62 = arith.mulf %58, %61 : vector<32x1xf32>
    %63 = arith.mulf %60, %60 : vector<32x1xf32>
    %64 = arith.subf %62, %63 : vector<32x1xf32>
    %cst_32 = arith.constant 9.99999974E-6 : f32
    %65 = vector.broadcast %cst_32 : f32 to vector<32x1xf32>
    %66 = arith.addf %64, %65 : vector<32x1xf32>
    %67 = math.rsqrt %66 : vector<32x1xf32>
    %68 = vector.broadcast %60 : vector<32x1xf32> to vector<32x128xf32>
    %69 = arith.subf %49, %68 : vector<32x128xf32>
    %70 = vector.broadcast %67 : vector<32x1xf32> to vector<32x128xf32>
    %71 = arith.mulf %69, %70 : vector<32x128xf32>
    %72 = vector.broadcast %51 : vector<1x128xf32> to vector<32x128xf32>
    %73 = arith.mulf %71, %72 : vector<32x128xf32>
    %74 = vector.broadcast %53 : vector<1x128xf32> to vector<32x128xf32>
    %75 = arith.addf %73, %74 : vector<32x128xf32>
    %76 = arith.truncf %75 : vector<32x128xf32> to vector<32x128xbf16>
    %c0_33 = arith.constant 0 : index
    %c0_34 = arith.constant 0 : index
    %c0_35 = arith.constant 0 : index
    %77 = vector.load %arg12[%c0_33, %c0_34, %c0_35] : memref<1x128x128xbf16, #tpu.memory_space<vmem>>, vector<1x128x128xbf16>
    %78 = vector.shape_cast %77 : vector<1x128x128xbf16> to vector<128x128xbf16>
    %cst_36 = arith.constant dense<0.000000e+00> : vector<32x128xf32>
    %79 = tpu.matmul %76, %78, %cst_36 {dimension_numbers = #tpu.dot_dimension_numbers<[1], [0], [0], [1], [0, 0, 1, 1], [], []>} : vector<32x128xbf16>, vector<128x128xbf16>, vector<32x128xf32> -> vector<32x128xf32>
    %c0_37 = arith.constant 0 : index
    %c0_38 = arith.constant 0 : index
    %c0_39 = arith.constant 0 : index
    %80 = vector.load %arg13[%c0_37, %c0_38, %c0_39] : memref<1x1x128xf32, #tpu.memory_space<vmem>>, vector<1x1x128xf32>
    %81 = vector.shape_cast %80 : vector<1x1x128xf32> to vector<1x128xf32>
    %82 = vector.broadcast %81 : vector<1x128xf32> to vector<32x128xf32>
    %83 = arith.addf %79, %82 : vector<32x128xf32>
    %84 = arith.mulf %83, %83 : vector<32x128xf32>
    %85 = arith.mulf %83, %84 : vector<32x128xf32>
    %cst_40 = arith.constant 4.471500e-02 : f32
    %86 = vector.broadcast %cst_40 : f32 to vector<32x128xf32>
    %87 = arith.mulf %86, %85 : vector<32x128xf32>
    %88 = arith.addf %83, %87 : vector<32x128xf32>
    %cst_41 = arith.constant 0.797884583 : f32
    %89 = vector.broadcast %cst_41 : f32 to vector<32x128xf32>
    %90 = arith.mulf %89, %88 : vector<32x128xf32>
    %91 = math.tanh %90 : vector<32x128xf32>
    %cst_42 = arith.constant 1.000000e+00 : f32
    %92 = vector.broadcast %cst_42 : f32 to vector<32x128xf32>
    %93 = arith.addf %92, %91 : vector<32x128xf32>
    %cst_43 = arith.constant 5.000000e-01 : f32
    %94 = vector.broadcast %cst_43 : f32 to vector<32x128xf32>
    %95 = arith.mulf %94, %93 : vector<32x128xf32>
    %96 = arith.mulf %83, %95 : vector<32x128xf32>
    %97 = arith.truncf %96 : vector<32x128xf32> to vector<32x128xbf16>
    %c0_44 = arith.constant 0 : index
    %c0_45 = arith.constant 0 : index
    %c0_46 = arith.constant 0 : index
    %98 = vector.load %arg14[%c0_44, %c0_45, %c0_46] : memref<1x128x128xbf16, #tpu.memory_space<vmem>>, vector<1x128x128xbf16>
    %99 = vector.shape_cast %98 : vector<1x128x128xbf16> to vector<128x128xbf16>
    %cst_47 = arith.constant dense<0.000000e+00> : vector<32x128xf32>
    %100 = tpu.matmul %97, %99, %cst_47 {dimension_numbers = #tpu.dot_dimension_numbers<[1], [0], [0], [1], [0, 0, 1, 1], [], []>} : vector<32x128xbf16>, vector<128x128xbf16>, vector<32x128xf32> -> vector<32x128xf32>
    %c0_48 = arith.constant 0 : index
    %c0_49 = arith.constant 0 : index
    %c0_50 = arith.constant 0 : index
    %101 = vector.load %arg15[%c0_48, %c0_49, %c0_50] : memref<1x1x128xf32, #tpu.memory_space<vmem>>, vector<1x1x128xf32>
    %102 = vector.shape_cast %101 : vector<1x1x128xf32> to vector<1x128xf32>
    %103 = vector.broadcast %102 : vector<1x128xf32> to vector<32x128xf32>
    %104 = arith.addf %100, %103 : vector<32x128xf32>
    %105 = arith.addf %104, %75 : vector<32x128xf32>
    %c0_51 = arith.constant 0 : index
    %c0_52 = arith.constant 0 : index
    %c0_53 = arith.constant 0 : index
    %106 = vector.load %arg16[%c0_51, %c0_52, %c0_53] : memref<1x1x128xf32, #tpu.memory_space<vmem>>, vector<1x1x128xf32>
    %107 = vector.shape_cast %106 : vector<1x1x128xf32> to vector<1x128xf32>
    %c0_54 = arith.constant 0 : index
    %c0_55 = arith.constant 0 : index
    %c0_56 = arith.constant 0 : index
    %108 = vector.load %arg17[%c0_54, %c0_55, %c0_56] : memref<1x1x128xf32, #tpu.memory_space<vmem>>, vector<1x1x128xf32>
    %109 = vector.shape_cast %108 : vector<1x1x128xf32> to vector<1x128xf32>
    %cst_57 = arith.constant dense<0.000000e+00> : vector<32xf32>
    %110 = vector.multi_reduction <add>, %105, %cst_57 [1] : vector<32x128xf32> to vector<32xf32>
    %111 = vector.shape_cast %110 : vector<32xf32> to vector<32x1xf32>
    %112 = arith.mulf %105, %105 : vector<32x128xf32>
    %cst_58 = arith.constant dense<0.000000e+00> : vector<32xf32>
    %113 = vector.multi_reduction <add>, %112, %cst_58 [1] : vector<32x128xf32> to vector<32xf32>
    %114 = vector.shape_cast %113 : vector<32xf32> to vector<32x1xf32>
    %cst_59 = arith.constant 3.125000e-02 : f32
    %115 = vector.broadcast %cst_59 : f32 to vector<32x1xf32>
    %116 = arith.mulf %111, %115 : vector<32x1xf32>
    %cst_60 = arith.constant 3.125000e-02 : f32
    %117 = vector.broadcast %cst_60 : f32 to vector<32x1xf32>
    %118 = arith.mulf %114, %117 : vector<32x1xf32>
    %119 = arith.mulf %116, %116 : vector<32x1xf32>
    %120 = arith.subf %118, %119 : vector<32x1xf32>
    %cst_61 = arith.constant 9.99999974E-6 : f32
    %121 = vector.broadcast %cst_61 : f32 to vector<32x1xf32>
    %122 = arith.addf %120, %121 : vector<32x1xf32>
    %123 = math.rsqrt %122 : vector<32x1xf32>
    %124 = vector.broadcast %116 : vector<32x1xf32> to vector<32x128xf32>
    %125 = arith.subf %105, %124 : vector<32x128xf32>
    %126 = vector.broadcast %123 : vector<32x1xf32> to vector<32x128xf32>
    %127 = arith.mulf %125, %126 : vector<32x128xf32>
    %128 = vector.broadcast %107 : vector<1x128xf32> to vector<32x128xf32>
    %129 = arith.mulf %127, %128 : vector<32x128xf32>
    %130 = vector.broadcast %109 : vector<1x128xf32> to vector<32x128xf32>
    %131 = arith.addf %129, %130 : vector<32x128xf32>
    %c0_62 = arith.constant 0 : index
    %c0_63 = arith.constant 0 : index
    %132 = vector.load %arg19[%c0_62, %c0_63] : memref<32x128xf32, #tpu.memory_space<vmem>>, vector<32x128xf32>
    tpu.vector_store %arg19[%c0_62, %c0_63], %131 {strides = array<i32>} : memref<32x128xf32, #tpu.memory_space<vmem>>, vector<32x128xf32>,
    %c1_i32 = arith.constant 1 : i32
    %133 = arith.cmpi eq, %arg0, %c1_i32 : i32
    %134 = arith.extui %133 : i1 to i32
    %c0_i32_64 = arith.constant 0 : i32
    %135 = arith.cmpi ne, %134, %c0_i32_64 : i32
    scf.if %135 {
      %c0_i32_65 = arith.constant 0 : i32
      %c32_i32 = arith.constant 32 : i32
      %136 = arith.addi %c0_i32_65, %c32_i32 : i32
      %c1_i32_66 = arith.constant 1 : i32
      scf.for %arg20 = %c0_i32_65 to %136 step %c1_i32_66  : i32 {
        %c1_i32_68 = arith.constant 1 : i32
        %137 = arith.muli %arg20, %c1_i32_68 : i32
        %c0_i32_69 = arith.constant 0 : i32
        %138 = arith.addi %c0_i32_69, %137 : i32
        %139 = arith.index_cast %138 : i32 to index
        %140 = memref.load %arg1[%139] : memref<32xi32, #tpu.memory_space<smem>>
        %141 = arith.index_cast %140 : i32 to index
        %c0_70 = arith.constant 0 : index
        %142 = vector.load %arg19[%141, %c0_70] : memref<32x128xf32, #tpu.memory_space<vmem>>, vector<1x128xf32>
        %143 = arith.index_cast %138 : i32 to index
        %c0_71 = arith.constant 0 : index
        %144 = vector.load %arg18[%143, %c0_71] : memref<32x128xf32, #tpu.memory_space<vmem>>, vector<1x128xf32>
        tpu.vector_store %arg18[%143, %c0_71], %142 {strides = array<i32>} : memref<32x128xf32, #tpu.memory_space<vmem>>, vector<1x128xf32>,
      }
      %c32_i32_67 = arith.constant 32 : i32
    } else {
    }
    return
  }
  func.func @transform_0(%arg0: i32, %arg1: memref<32xi32, #tpu.memory_space<smem>>) -> (i32, i32) {
    %c0_i32 = arith.constant 0 : i32
    %c0_i32_0 = arith.constant 0 : i32
    %c0_i32_1 = arith.constant 0 : i32
    return %c0_i32, %c0_i32_0 : i32, i32
  }
  func.func @transform_1(%arg0: i32, %arg1: memref<32xi32, #tpu.memory_space<smem>>) -> (i32, i32) {
    %c0_i32 = arith.constant 0 : i32
    %c0_i32_0 = arith.constant 0 : i32
    %c0_i32_1 = arith.constant 0 : i32
    return %c0_i32, %c0_i32_0 : i32, i32
  }
  func.func @transform_2(%arg0: i32, %arg1: memref<32xi32, #tpu.memory_space<smem>>) -> (i32, i32) {
    %c0_i32 = arith.constant 0 : i32
    %c0_i32_0 = arith.constant 0 : i32
    %c0_i32_1 = arith.constant 0 : i32
    return %c0_i32, %c0_i32_0 : i32, i32
  }
  func.func @transform_3(%arg0: i32, %arg1: memref<32xi32, #tpu.memory_space<smem>>) -> (i32, i32) {
    %c0_i32 = arith.constant 0 : i32
    %c0_i32_0 = arith.constant 0 : i32
    %c0_i32_1 = arith.constant 0 : i32
    return %c0_i32, %c0_i32_0 : i32, i32
  }
  func.func @transform_4(%arg0: i32, %arg1: memref<32xi32, #tpu.memory_space<smem>>) -> (i32, i32, i32) {
    %c0_i32 = arith.constant 0 : i32
    %c0_i32_0 = arith.constant 0 : i32
    %c0_i32_1 = arith.constant 0 : i32
    return %arg0, %c0_i32, %c0_i32_0 : i32, i32, i32
  }
  func.func @transform_5(%arg0: i32, %arg1: memref<32xi32, #tpu.memory_space<smem>>) -> (i32, i32, i32) {
    %c0_i32 = arith.constant 0 : i32
    %c0_i32_0 = arith.constant 0 : i32
    %c0_i32_1 = arith.constant 0 : i32
    return %arg0, %c0_i32, %c0_i32_0 : i32, i32, i32
  }
  func.func @transform_6(%arg0: i32, %arg1: memref<32xi32, #tpu.memory_space<smem>>) -> (i32, i32, i32) {
    %c0_i32 = arith.constant 0 : i32
    %c0_i32_0 = arith.constant 0 : i32
    %c0_i32_1 = arith.constant 0 : i32
    return %arg0, %c0_i32, %c0_i32_0 : i32, i32, i32
  }
  func.func @transform_7(%arg0: i32, %arg1: memref<32xi32, #tpu.memory_space<smem>>) -> (i32, i32, i32) {
    %c0_i32 = arith.constant 0 : i32
    %c0_i32_0 = arith.constant 0 : i32
    %c0_i32_1 = arith.constant 0 : i32
    return %arg0, %c0_i32, %c0_i32_0 : i32, i32, i32
  }
  func.func @transform_8(%arg0: i32, %arg1: memref<32xi32, #tpu.memory_space<smem>>) -> (i32, i32, i32) {
    %c0_i32 = arith.constant 0 : i32
    %c0_i32_0 = arith.constant 0 : i32
    %c0_i32_1 = arith.constant 0 : i32
    return %arg0, %c0_i32, %c0_i32_0 : i32, i32, i32
  }
  func.func @transform_9(%arg0: i32, %arg1: memref<32xi32, #tpu.memory_space<smem>>) -> (i32, i32, i32) {
    %c0_i32 = arith.constant 0 : i32
    %c0_i32_0 = arith.constant 0 : i32
    %c0_i32_1 = arith.constant 0 : i32
    return %arg0, %c0_i32, %c0_i32_0 : i32, i32, i32
  }
  func.func @transform_10(%arg0: i32, %arg1: memref<32xi32, #tpu.memory_space<smem>>) -> (i32, i32, i32) {
    %c0_i32 = arith.constant 0 : i32
    %c0_i32_0 = arith.constant 0 : i32
    %c0_i32_1 = arith.constant 0 : i32
    return %arg0, %c0_i32, %c0_i32_0 : i32, i32, i32
  }
  func.func @transform_11(%arg0: i32, %arg1: memref<32xi32, #tpu.memory_space<smem>>) -> (i32, i32, i32) {
    %c0_i32 = arith.constant 0 : i32
    %c0_i32_0 = arith.constant 0 : i32
    %c0_i32_1 = arith.constant 0 : i32
    return %arg0, %c0_i32, %c0_i32_0 : i32, i32, i32
  }
  func.func @transform_12(%arg0: i32, %arg1: memref<32xi32, #tpu.memory_space<smem>>) -> (i32, i32, i32) {
    %c0_i32 = arith.constant 0 : i32
    %c0_i32_0 = arith.constant 0 : i32
    %c0_i32_1 = arith.constant 0 : i32
    return %arg0, %c0_i32, %c0_i32_0 : i32, i32, i32
  }
  func.func @transform_13(%arg0: i32, %arg1: memref<32xi32, #tpu.memory_space<smem>>) -> (i32, i32, i32) {
    %c0_i32 = arith.constant 0 : i32
    %c0_i32_0 = arith.constant 0 : i32
    %c0_i32_1 = arith.constant 0 : i32
    return %arg0, %c0_i32, %c0_i32_0 : i32, i32, i32
  }
  func.func @transform_14(%arg0: i32, %arg1: memref<32xi32, #tpu.memory_space<smem>>) -> (i32, i32, i32) {
    %c0_i32 = arith.constant 0 : i32
    %c0_i32_0 = arith.constant 0 : i32
    %c0_i32_1 = arith.constant 0 : i32
    return %arg0, %c0_i32, %c0_i32_0 : i32, i32, i32
  }
  func.func @transform_15(%arg0: i32, %arg1: memref<32xi32, #tpu.memory_space<smem>>) -> (i32, i32, i32) {
    %c0_i32 = arith.constant 0 : i32
    %c0_i32_0 = arith.constant 0 : i32
    %c0_i32_1 = arith.constant 0 : i32
    return %arg0, %c0_i32, %c0_i32_0 : i32, i32, i32
  }
  func.func @transform_16(%arg0: i32, %arg1: memref<32xi32, #tpu.memory_space<smem>>) -> (i32, i32) {
    %c0_i32 = arith.constant 0 : i32
    %c0_i32_0 = arith.constant 0 : i32
    %c0_i32_1 = arith.constant 0 : i32
    return %c0_i32, %c0_i32_0 : i32, i32
  }
}

</mosaic_0001>

<llo_original>
// kernel: _encoder_forward.1
$region0: #{_encoder_forward.1}
  #allocation0 [shape = 'u32[]', space=smem, size = 0x4, offset = 0x4, fixed_abs, tag = 'smem constant byte address 0x4 - core index']
  #allocation1 [shape = 'u32[144,128]{1,0:T(1,128)}', space=vmem, size = 0x12000, scoped, tag = 'internal scratch']
  #allocation2 [shape = 'f32[32,128]{1,0:T(8,128)}', space=vmem, size = 0x4000, scoped, tag = 'scratch operand']
  #allocation3 [shape = 's32[1]{0}', space=sflag, size = 0x4, scoped, tag = 'scoped memory for _encoder_forward.1']
  #allocation4 [shape = 'u8[512]{0}', space=smem, size = 0x200, scoped, tag = 'prefetched SMEM operand 0']
  %s0 = inlined_call_operand.vmem [shape: s32[32], index: 0, kind: input, shape index: {}]
  %s1 = inlined_call_operand.vmem [shape: f32[32,128], index: 1, kind: input, shape index: {}]
  %s2 = inlined_call_operand.vmem [shape: f32[2,16], index: 2, kind: input, shape index: {}]
  %s3 = inlined_call_operand.vmem [shape: f32[1,128], index: 3, kind: input, shape index: {}]
  %s4 = inlined_call_operand.vmem [shape: f32[1,128], index: 4, kind: input, shape index: {}]
  %s5 = inlined_call_operand.vmem [shape: bf16[2,128,384], index: 5, kind: input, shape index: {}]
  %s6 = inlined_call_operand.vmem [shape: f32[2,1,384], index: 6, kind: input, shape index: {}]
  %s7 = inlined_call_operand.hbm [shape: bf16[2,128,128], index: 7, kind: input, shape index: {}]
  %s8 = inlined_call_operand.vmem [shape: f32[2,1,128], index: 8, kind: input, shape index: {}]
  %s9 = inlined_call_operand.vmem [shape: f32[2,1,128], index: 9, kind: input, shape index: {}]
  %s10 = inlined_call_operand.vmem [shape: f32[2,1,128], index: 10, kind: input, shape index: {}]
  %s11 = inlined_call_operand.hbm [shape: bf16[2,128,128], index: 11, kind: input, shape index: {}]
  %s12 = inlined_call_operand.vmem [shape: f32[2,1,128], index: 12, kind: input, shape index: {}]
  %s13 = inlined_call_operand.hbm [shape: bf16[2,128,128], index: 13, kind: input, shape index: {}]
  %s14 = inlined_call_operand.vmem [shape: f32[2,1,128], index: 14, kind: input, shape index: {}]
  %s15 = inlined_call_operand.vmem [shape: f32[2,1,128], index: 15, kind: input, shape index: {}]
  %s16 = inlined_call_operand.vmem [shape: f32[2,1,128], index: 16, kind: input, shape index: {}]
  %s17 = inlined_call_operand.hbm [shape: f32[32,128], index: 17, kind: output, shape index: {}]
  %s18 = sld [smem:[#allocation0]]
  $region124: #{_encoder_forward.1} parent=0
    _
  %s20 = ssub.s32 1, %s18
  %s21 = scalar_select 0, %s20, %s18
  %s22 = sshll.u32 %s0, 4
  %s23 = int_to_ptr.vmem [resolvable:$true] %s22
  %25 = dma.vmem_to_smem %s23, 16, [#allocation4], [#allocation3]
  %26 = dma.done [#allocation3], 16
  %27 = sfence
  $region1: #{_encoder_forward.1} parent=0
    #allocation5 [shape = 'u8[65536]{0}', space=vmem, size = 0x10000, scoped, tag = 'input window, operand 7']
    #allocation6 [shape = 's32[2]{0}', space=sflag, size = 0x8, scoped, tag = 'scoped memory for _encoder_forward.1']
    #allocation7 [shape = 's32[2]{0}', space=sflag, size = 0x8, scoped, tag = 'scoped memory for _encoder_forward.1']
    #allocation8 [shape = 'u8[65536]{0}', space=vmem, size = 0x10000, scoped, tag = 'input window, operand 11']
    #allocation9 [shape = 's32[2]{0}', space=sflag, size = 0x8, scoped, tag = 'scoped memory for _encoder_forward.1']
    #allocation10 [shape = 'u8[65536]{0}', space=vmem, size = 0x10000, scoped, tag = 'input window, operand 13']
    #allocation11 [shape = 'u8[16384]{0}', space=vmem, size = 0x4000, scoped, tag = 'output window, operand 0, single buffered']
    %28 = vsyncpa [#allocation6], 0
    %s29 = scalar_lea.sflag [#allocation6], 1
    %30 = vsyncpa %s29, 0
    %31 = vsyncpa [#allocation9], 0
    %s32 = scalar_lea.sflag [#allocation9], 1
    %33 = vsyncpa %s32, 0
    %34 = vsyncpa [#allocation7], 0
    loop: start=0, step=1, limit=4
    $region2: #{_encoder_forward.1} parent=1 // loop_pre_header
      _
    $region3: #{_encoder_forward.1} parent=1 // loop_header
      %s36 = sphi 0, %s40
      %p37 = scmp.ge.s32.totalorder %s36, 4
      %s44 = sphi 0, %s44
      %s46 = sphi 0, %s44
      %s47 = sphi 0, %s46
      %s61 = sphi 0, %s47
      %s65 = sphi 0, %s65
      %s67 = sphi 0, %s65
      %s68 = sphi 0, %s67
      %s82 = sphi 0, %s68
      %s86 = sphi 0, %s86
      %s88 = sphi 0, %s86
      %s89 = sphi 0, %s88
      %s103 = sphi 0, %s89
      %s107 = sphi 0, %s107
      %s109 = sphi 0, %s107
      %s110 = sphi 0, %s109
      %s124 = sphi 0, %s110
      %s130 = sphi 0, %s132
      %s133 = sphi 0, %s130
      %s134 = sphi 0, %s133
      %s150 = sphi 0, %s134
      %s156 = sphi 0, %s158
      %s159 = sphi 0, %s156
      %s160 = sphi 0, %s159
      %s176 = sphi 0, %s160
      %s182 = sphi 0, %s184
      %s185 = sphi 0, %s182
      %s186 = sphi 0, %s185
      %s202 = sphi 0, %s186
      %s208 = sphi 0, %s210
      %s211 = sphi 0, %s208
      %s212 = sphi 0, %s211
      %s228 = sphi 0, %s212
      %s234 = sphi 0, %s236
      %s237 = sphi 0, %s234
      %s238 = sphi 0, %s237
      %s254 = sphi 0, %s238
      %s260 = sphi 0, %s262
      %s263 = sphi 0, %s260
      %s264 = sphi 0, %s263
      %s280 = sphi 0, %s264
      %s286 = sphi 0, %s288
      %s289 = sphi 0, %s286
      %s290 = sphi 0, %s289
      %s306 = sphi 0, %s290
      %s312 = sphi 0, %s314
      %s315 = sphi 0, %s312
      %s316 = sphi 0, %s315
      %s332 = sphi 0, %s316
      %s338 = sphi 0, %s340
      %s341 = sphi 0, %s338
      %s342 = sphi 0, %s341
      %s358 = sphi 0, %s342
      %s364 = sphi 0, %s366
      %s367 = sphi 0, %s364
      %s368 = sphi 0, %s367
      %s384 = sphi 0, %s368
      %s390 = sphi 0, %s392
      %s393 = sphi 0, %s390
      %s394 = sphi 0, %s393
      %s410 = sphi 0, %s394
      %s416 = sphi 0, %s418
      %s419 = sphi 0, %s416
      %s420 = sphi 0, %s419
      %s436 = sphi 0, %s420
      %s440 = sphi 0, %s440
      %s442 = sphi 0, %s440
      %s443 = sphi 0, %s442
      %s457 = sphi 0, %s443
    $region4: #{_encoder_forward.1} parent=1 // loop_header_branch
      %39 = sbr.rel (%p37) target = $region8
    $region5: #{_encoder_forward.1} parent=1 // loop_body
      %s41 = ssub.s32 %s36, 1
      %s42 = ssub.s32 %s36, 2
      %s43 = sadd.s32 %s36, 1
      %s45 = sadd.s32 %s44, 1
      %p48 = scmp.eq.s32.totalorder %s36, 1
      %p49 = scmp.ne.s32.totalorder %s44, %s46
      %p50 = scmp.eq.s32.totalorder %s36, 0
      %p51 = por %p49, %p50
      %p52 = scmp.ne.s32.totalorder %s44, %s46
      %p53 = scmp.eq.s32.totalorder %s41, 1
      %p54 = por %p52, %p53
      %p55 = scmp.ne.s32.totalorder %s46, %s47
      %p56 = scmp.eq.s32.totalorder %s41, 0
      %p57 = por %p55, %p56
      %p58 = scmp.ne.s32.totalorder %s46, %s47
      %p59 = scmp.eq.s32.totalorder %s42, 1
      %p60 = por %p58, %p59
      %p62 = scmp.ne.s32.totalorder %s47, %s61
      %p63 = scmp.eq.s32.totalorder %s42, 0
      %p64 = por %p62, %p63
      %s66 = sadd.s32 %s65, 1
      %p69 = scmp.eq.s32.totalorder %s36, 1
      %p70 = scmp.ne.s32.totalorder %s65, %s67
      %p71 = scmp.eq.s32.totalorder %s36, 0
      %p72 = por %p70, %p71
      %p73 = scmp.ne.s32.totalorder %s65, %s67
      %p74 = scmp.eq.s32.totalorder %s41, 1
      %p75 = por %p73, %p74
      %p76 = scmp.ne.s32.totalorder %s67, %s68
      %p77 = scmp.eq.s32.totalorder %s41, 0
      %p78 = por %p76, %p77
      %p79 = scmp.ne.s32.totalorder %s67, %s68
      %p80 = scmp.eq.s32.totalorder %s42, 1
      %p81 = por %p79, %p80
      %p83 = scmp.ne.s32.totalorder %s68, %s82
      %p84 = scmp.eq.s32.totalorder %s42, 0
      %p85 = por %p83, %p84
      %s87 = sadd.s32 %s86, 1
      %p90 = scmp.eq.s32.totalorder %s36, 1
      %p91 = scmp.ne.s32.totalorder %s86, %s88
      %p92 = scmp.eq.s32.totalorder %s36, 0
      %p93 = por %p91, %p92
      %p94 = scmp.ne.s32.totalorder %s86, %s88
      %p95 = scmp.eq.s32.totalorder %s41, 1
      %p96 = por %p94, %p95
      %p97 = scmp.ne.s32.totalorder %s88, %s89
      %p98 = scmp.eq.s32.totalorder %s41, 0
      %p99 = por %p97, %p98
      %p100 = scmp.ne.s32.totalorder %s88, %s89
      %p101 = scmp.eq.s32.totalorder %s42, 1
      %p102 = por %p100, %p101
      %p104 = scmp.ne.s32.totalorder %s89, %s103
      %p105 = scmp.eq.s32.totalorder %s42, 0
      %p106 = por %p104, %p105
      %s108 = sadd.s32 %s107, 1
      %p111 = scmp.eq.s32.totalorder %s36, 1
      %p112 = scmp.ne.s32.totalorder %s107, %s109
      %p113 = scmp.eq.s32.totalorder %s36, 0
      %p114 = por %p112, %p113
      %p115 = scmp.ne.s32.totalorder %s107, %s109
      %p116 = scmp.eq.s32.totalorder %s41, 1
      %p117 = por %p115, %p116
      %p118 = scmp.ne.s32.totalorder %s109, %s110
      %p119 = scmp.eq.s32.totalorder %s41, 0
      %p120 = por %p118, %p119
      %p121 = scmp.ne.s32.totalorder %s109, %s110
      %p122 = scmp.eq.s32.totalorder %s42, 1
      %p123 = por %p121, %p122
      %p125 = scmp.ne.s32.totalorder %s110, %s124
      %p126 = scmp.eq.s32.totalorder %s42, 0
      %p127 = por %p125, %p126
      %s128 = ssub.s32 %s36, %s43
      %p129 = scmp.eq.s32.totalorder %s128, 0
      %s131 = sadd.s32 %s130, 1
      %s132 = scalar_select %p129, %s130, %s131
      %p135 = pneg %p129
      %p136 = scmp.eq.s32.totalorder %s36, 1
      %p137 = por %p135, %p136
      %p138 = scmp.ne.s32.totalorder %s130, %s133
      %p139 = scmp.eq.s32.totalorder %s36, 0
      %p140 = por %p138, %p139
      %p141 = scmp.ne.s32.totalorder %s130, %s133
      %p142 = scmp.eq.s32.totalorder %s41, 1
      %p143 = por %p141, %p142
      %p144 = scmp.ne.s32.totalorder %s133, %s134
      %p145 = scmp.eq.s32.totalorder %s41, 0
      %p146 = por %p144, %p145
      %p147 = scmp.ne.s32.totalorder %s133, %s134
      %p148 = scmp.eq.s32.totalorder %s42, 1
      %p149 = por %p147, %p148
      %p151 = scmp.ne.s32.totalorder %s134, %s150
      %p152 = scmp.eq.s32.totalorder %s42, 0
      %p153 = por %p151, %p152
      %s154 = ssub.s32 %s36, %s43
      %p155 = scmp.eq.s32.totalorder %s154, 0
      %s157 = sadd.s32 %s156, 1
      %s158 = scalar_select %p155, %s156, %s157
      %p161 = pneg %p155
      %p162 = scmp.eq.s32.totalorder %s36, 1
      %p163 = por %p161, %p162
      %p164 = scmp.ne.s32.totalorder %s156, %s159
      %p165 = scmp.eq.s32.totalorder %s36, 0
      %p166 = por %p164, %p165
      %p167 = scmp.ne.s32.totalorder %s156, %s159
      %p168 = scmp.eq.s32.totalorder %s41, 1
      %p169 = por %p167, %p168
      %p170 = scmp.ne.s32.totalorder %s159, %s160
      %p171 = scmp.eq.s32.totalorder %s41, 0
      %p172 = por %p170, %p171
      %p173 = scmp.ne.s32.totalorder %s159, %s160
      %p174 = scmp.eq.s32.totalorder %s42, 1
      %p175 = por %p173, %p174
      %p177 = scmp.ne.s32.totalorder %s160, %s176
      %p178 = scmp.eq.s32.totalorder %s42, 0
      %p179 = por %p177, %p178
      %s180 = ssub.s32 %s36, %s43
      %p181 = scmp.eq.s32.totalorder %s180, 0
      %s183 = sadd.s32 %s182, 1
      %s184 = scalar_select %p181, %s182, %s183
      %p187 = pneg %p181
      %p188 = scmp.eq.s32.totalorder %s36, 1
      %p189 = por %p187, %p188
      %p190 = scmp.ne.s32.totalorder %s182, %s185
      %p191 = scmp.eq.s32.totalorder %s36, 0
      %p192 = por %p190, %p191
      %p193 = scmp.ne.s32.totalorder %s182, %s185
      %p194 = scmp.eq.s32.totalorder %s41, 1
      %p195 = por %p193, %p194
      %p196 = scmp.ne.s32.totalorder %s185, %s186
      %p197 = scmp.eq.s32.totalorder %s41, 0
      %p198 = por %p196, %p197
      %p199 = scmp.ne.s32.totalorder %s185, %s186
      %p200 = scmp.eq.s32.totalorder %s42, 1
      %p201 = por %p199, %p200
      %p203 = scmp.ne.s32.totalorder %s186, %s202
      %p204 = scmp.eq.s32.totalorder %s42, 0
      %p205 = por %p203, %p204
      %s206 = ssub.s32 %s36, %s43
      %p207 = scmp.eq.s32.totalorder %s206, 0
      %s209 = sadd.s32 %s208, 1
      %s210 = scalar_select %p207, %s208, %s209
      %p213 = pneg %p207
      %p214 = scmp.eq.s32.totalorder %s36, 1
      %p215 = por %p213, %p214
      %p216 = scmp.ne.s32.totalorder %s208, %s211
      %p217 = scmp.eq.s32.totalorder %s36, 0
      %p218 = por %p216, %p217
      %p219 = scmp.ne.s32.totalorder %s208, %s211
      %p220 = scmp.eq.s32.totalorder %s41, 1
      %p221 = por %p219, %p220
      %p222 = scmp.ne.s32.totalorder %s211, %s212
      %p223 = scmp.eq.s32.totalorder %s41, 0
      %p224 = por %p222, %p223
      %p225 = scmp.ne.s32.totalorder %s211, %s212
      %p226 = scmp.eq.s32.totalorder %s42, 1
      %p227 = por %p225, %p226
      %p229 = scmp.ne.s32.totalorder %s212, %s228
      %p230 = scmp.eq.s32.totalorder %s42, 0
      %p231 = por %p229, %p230
      %s232 = ssub.s32 %s36, %s43
      %p233 = scmp.eq.s32.totalorder %s232, 0
      %s235 = sadd.s32 %s234, 1
      %s236 = scalar_select %p233, %s234, %s235
      %p239 = pneg %p233
      %p240 = scmp.eq.s32.totalorder %s36, 1
      %p241 = por %p239, %p240
      %p242 = scmp.ne.s32.totalorder %s234, %s237
      %p243 = scmp.eq.s32.totalorder %s36, 0
      %p244 = por %p242, %p243
      %p245 = scmp.ne.s32.totalorder %s234, %s237
      %p246 = scmp.eq.s32.totalorder %s41, 1
      %p247 = por %p245, %p246
      %p248 = scmp.ne.s32.totalorder %s237, %s238
      %p249 = scmp.eq.s32.totalorder %s41, 0
      %p250 = por %p248, %p249
      %p251 = scmp.ne.s32.totalorder %s237, %s238
      %p252 = scmp.eq.s32.totalorder %s42, 1
      %p253 = por %p251, %p252
      %p255 = scmp.ne.s32.totalorder %s238, %s254
      %p256 = scmp.eq.s32.totalorder %s42, 0
      %p257 = por %p255, %p256
      %s258 = ssub.s32 %s36, %s43
      %p259 = scmp.eq.s32.totalorder %s258, 0
      %s261 = sadd.s32 %s260, 1
      %s262 = scalar_select %p259, %s260, %s261
      %p265 = pneg %p259
      %p266 = scmp.eq.s32.totalorder %s36, 1
      %p267 = por %p265, %p266
      %p268 = scmp.ne.s32.totalorder %s260, %s263
      %p269 = scmp.eq.s32.totalorder %s36, 0
      %p270 = por %p268, %p269
      %p271 = scmp.ne.s32.totalorder %s260, %s263
      %p272 = scmp.eq.s32.totalorder %s41, 1
      %p273 = por %p271, %p272
      %p274 = scmp.ne.s32.totalorder %s263, %s264
      %p275 = scmp.eq.s32.totalorder %s41, 0
      %p276 = por %p274, %p275
      %p277 = scmp.ne.s32.totalorder %s263, %s264
      %p278 = scmp.eq.s32.totalorder %s42, 1
      %p279 = por %p277, %p278
      %p281 = scmp.ne.s32.totalorder %s264, %s280
      %p282 = scmp.eq.s32.totalorder %s42, 0
      %p283 = por %p281, %p282
      %s284 = ssub.s32 %s36, %s43
      %p285 = scmp.eq.s32.totalorder %s284, 0
      %s287 = sadd.s32 %s286, 1
      %s288 = scalar_select %p285, %s286, %s287
      %p291 = pneg %p285
      %p292 = scmp.eq.s32.totalorder %s36, 1
      %p293 = por %p291, %p292
      %p294 = scmp.ne.s32.totalorder %s286, %s289
      %p295 = scmp.eq.s32.totalorder %s36, 0
      %p296 = por %p294, %p295
      %p297 = scmp.ne.s32.totalorder %s286, %s289
      %p298 = scmp.eq.s32.totalorder %s41, 1
      %p299 = por %p297, %p298
      %p300 = scmp.ne.s32.totalorder %s289, %s290
      %p301 = scmp.eq.s32.totalorder %s41, 0
      %p302 = por %p300, %p301
      %p303 = scmp.ne.s32.totalorder %s289, %s290
      %p304 = scmp.eq.s32.totalorder %s42, 1
      %p305 = por %p303, %p304
      %p307 = scmp.ne.s32.totalorder %s290, %s306
      %p308 = scmp.eq.s32.totalorder %s42, 0
      %p309 = por %p307, %p308
      %s310 = ssub.s32 %s36, %s43
      %p311 = scmp.eq.s32.totalorder %s310, 0
      %s313 = sadd.s32 %s312, 1
      %s314 = scalar_select %p311, %s312, %s313
      %p317 = pneg %p311
      %p318 = scmp.eq.s32.totalorder %s36, 1
      %p319 = por %p317, %p318
      %p320 = scmp.ne.s32.totalorder %s312, %s315
      %p321 = scmp.eq.s32.totalorder %s36, 0
      %p322 = por %p320, %p321
      %p323 = scmp.ne.s32.totalorder %s312, %s315
      %p324 = scmp.eq.s32.totalorder %s41, 1
      %p325 = por %p323, %p324
      %p326 = scmp.ne.s32.totalorder %s315, %s316
      %p327 = scmp.eq.s32.totalorder %s41, 0
      %p328 = por %p326, %p327
      %p329 = scmp.ne.s32.totalorder %s315, %s316
      %p330 = scmp.eq.s32.totalorder %s42, 1
      %p331 = por %p329, %p330
      %p333 = scmp.ne.s32.totalorder %s316, %s332
      %p334 = scmp.eq.s32.totalorder %s42, 0
      %p335 = por %p333, %p334
      %s336 = ssub.s32 %s36, %s43
      %p337 = scmp.eq.s32.totalorder %s336, 0
      %s339 = sadd.s32 %s338, 1
      %s340 = scalar_select %p337, %s338, %s339
      %p343 = pneg %p337
      %p344 = scmp.eq.s32.totalorder %s36, 1
      %p345 = por %p343, %p344
      %p346 = scmp.ne.s32.totalorder %s338, %s341
      %p347 = scmp.eq.s32.totalorder %s36, 0
      %p348 = por %p346, %p347
      %p349 = scmp.ne.s32.totalorder %s338, %s341
      %p350 = scmp.eq.s32.totalorder %s41, 1
      %p351 = por %p349, %p350
      %p352 = scmp.ne.s32.totalorder %s341, %s342
      %p353 = scmp.eq.s32.totalorder %s41, 0
      %p354 = por %p352, %p353
      %p355 = scmp.ne.s32.totalorder %s341, %s342
      %p356 = scmp.eq.s32.totalorder %s42, 1
      %p357 = por %p355, %p356
      %p359 = scmp.ne.s32.totalorder %s342, %s358
      %p360 = scmp.eq.s32.totalorder %s42, 0
      %p361 = por %p359, %p360
      %s362 = ssub.s32 %s36, %s43
      %p363 = scmp.eq.s32.totalorder %s362, 0
      %s365 = sadd.s32 %s364, 1
      %s366 = scalar_select %p363, %s364, %s365
      %p369 = pneg %p363
      %p370 = scmp.eq.s32.totalorder %s36, 1
      %p371 = por %p369, %p370
      %p372 = scmp.ne.s32.totalorder %s364, %s367
      %p373 = scmp.eq.s32.totalorder %s36, 0
      %p374 = por %p372, %p373
      %p375 = scmp.ne.s32.totalorder %s364, %s367
      %p376 = scmp.eq.s32.totalorder %s41, 1
      %p377 = por %p375, %p376
      %p378 = scmp.ne.s32.totalorder %s367, %s368
      %p379 = scmp.eq.s32.totalorder %s41, 0
      %p380 = por %p378, %p379
      %p381 = scmp.ne.s32.totalorder %s367, %s368
      %p382 = scmp.eq.s32.totalorder %s42, 1
      %p383 = por %p381, %p382
      %p385 = scmp.ne.s32.totalorder %s368, %s384
      %p386 = scmp.eq.s32.totalorder %s42, 0
      %p387 = por %p385, %p386
      %s388 = ssub.s32 %s36, %s43
      %p389 = scmp.eq.s32.totalorder %s388, 0
      %s391 = sadd.s32 %s390, 1
      %s392 = scalar_select %p389, %s390, %s391
      %p395 = pneg %p389
      %p396 = scmp.eq.s32.totalorder %s36, 1
      %p397 = por %p395, %p396
      %p398 = scmp.ne.s32.totalorder %s390, %s393
      %p399 = scmp.eq.s32.totalorder %s36, 0
      %p400 = por %p398, %p399
      %p401 = scmp.ne.s32.totalorder %s390, %s393
      %p402 = scmp.eq.s32.totalorder %s41, 1
      %p403 = por %p401, %p402
      %p404 = scmp.ne.s32.totalorder %s393, %s394
      %p405 = scmp.eq.s32.totalorder %s41, 0
      %p406 = por %p404, %p405
      %p407 = scmp.ne.s32.totalorder %s393, %s394
      %p408 = scmp.eq.s32.totalorder %s42, 1
      %p409 = por %p407, %p408
      %p411 = scmp.ne.s32.totalorder %s394, %s410
      %p412 = scmp.eq.s32.totalorder %s42, 0
      %p413 = por %p411, %p412
      %s414 = ssub.s32 %s36, %s43
      %p415 = scmp.eq.s32.totalorder %s414, 0
      %s417 = sadd.s32 %s416, 1
      %s418 = scalar_select %p415, %s416, %s417
      %p421 = pneg %p415
      %p422 = scmp.eq.s32.totalorder %s36, 1
      %p423 = por %p421, %p422
      %p424 = scmp.ne.s32.totalorder %s416, %s419
      %p425 = scmp.eq.s32.totalorder %s36, 0
      %p426 = por %p424, %p425
      %p427 = scmp.ne.s32.totalorder %s416, %s419
      %p428 = scmp.eq.s32.totalorder %s41, 1
      %p429 = por %p427, %p428
      %p430 = scmp.ne.s32.totalorder %s419, %s420
      %p431 = scmp.eq.s32.totalorder %s41, 0
      %p432 = por %p430, %p431
      %p433 = scmp.ne.s32.totalorder %s419, %s420
      %p434 = scmp.eq.s32.totalorder %s42, 1
      %p435 = por %p433, %p434
      %p437 = scmp.ne.s32.totalorder %s420, %s436
      %p438 = scmp.eq.s32.totalorder %s42, 0
      %p439 = por %p437, %p438
      %s441 = sadd.s32 %s440, 1
      %p444 = scmp.eq.s32.totalorder %s36, 1
      %p445 = scmp.ne.s32.totalorder %s440, %s442
      %p446 = scmp.eq.s32.totalorder %s36, 0
      %p447 = por %p445, %p446
      %p448 = scmp.ne.s32.totalorder %s440, %s442
      %p449 = scmp.eq.s32.totalorder %s41, 1
      %p450 = por %p448, %p449
      %p451 = scmp.ne.s32.totalorder %s442, %s443
      %p452 = scmp.eq.s32.totalorder %s41, 0
      %p453 = por %p451, %p452
      %p454 = scmp.ne.s32.totalorder %s442, %s443
      %p455 = scmp.eq.s32.totalorder %s42, 1
      %p456 = por %p454, %p455
      %p458 = scmp.ne.s32.totalorder %s443, %s457
      %p459 = scmp.eq.s32.totalorder %s42, 0
      %p460 = por %p458, %p459
      %p461 = scmp.le.s32.totalorder 1, %s36
      %p462 = scmp.lt.s32.totalorder %s36, 3
      %p463 = pnand %p461, %p462
      %p464 = pneg %p463
      // Predicated region
      $region9: #{_encoder_forward.1} parent=5 // pred_check
        _
      $region10: #{_encoder_forward.1} parent=5 // pred_check_branch
        %466 = sbr.rel (%p463) target = $region12
      $region11: #{_encoder_forward.1} parent=5 // pred_region
        %s467 = ssub.s32 %s36, 1
        // Predicated region
        $region13: #{_encoder_forward.1} parent=11 // pred_check
          %p468 = pneg %p57
        $region14: #{_encoder_forward.1} parent=11 // pred_check_branch
          %470 = sbr.rel (%p468) target = $region16
        $region15: #{_encoder_forward.1} parent=11 // pred_region
          _
        $region16: #{_encoder_forward.1} parent=11 // pred_fallthru
          _
        // Predicated region
        $region17: #{_encoder_forward.1} parent=11 // pred_check
          %p471 = pneg %p78
        $region18: #{_encoder_forward.1} parent=11 // pred_check_branch
          %473 = sbr.rel (%p471) target = $region20
        $region19: #{_encoder_forward.1} parent=11 // pred_region
          _
        $region20: #{_encoder_forward.1} parent=11 // pred_fallthru
          _
        // Predicated region
        $region21: #{_encoder_forward.1} parent=11 // pred_check
          %p474 = pneg %p99
        $region22: #{_encoder_forward.1} parent=11 // pred_check_branch
          %476 = sbr.rel (%p474) target = $region24
        $region23: #{_encoder_forward.1} parent=11 // pred_region
          _
        $region24: #{_encoder_forward.1} parent=11 // pred_fallthru
          _
        // Predicated region
        $region25: #{_encoder_forward.1} parent=11 // pred_check
          %p477 = pneg %p120
        $region26: #{_encoder_forward.1} parent=11 // pred_check_branch
          %479 = sbr.rel (%p477) target = $region28
        $region27: #{_encoder_forward.1} parent=11 // pred_region
          _
        $region28: #{_encoder_forward.1} parent=11 // pred_fallthru
          _
      $region12: #{_encoder_forward.1} parent=5 // pred_fallthru
        _
      %p480 = scmp.lt.s32.totalorder %s36, 2
      // Predicated region
      $region29: #{_encoder_forward.1} parent=5 // pred_check
        %p481 = pneg %p480
      $region30: #{_encoder_forward.1} parent=5 // pred_check_branch
        %483 = sbr.rel (%p481) target = $region32
      $region31: #{_encoder_forward.1} parent=5 // pred_region
        // Predicated region
        $region33: #{_encoder_forward.1} parent=31 // pred_check
          %p484 = pneg %p140
        $region34: #{_encoder_forward.1} parent=31 // pred_check_branch
          %486 = sbr.rel (%p484) target = $region36
        $region35: #{_encoder_forward.1} parent=31 // pred_region
          %p487 = scmp.lt.s32.totalorder %s36, 1
          %s488 = scalar_select %p487, %s36, 1
          %s489 = smul.addr %s488, 48
          %s490 = smul.addr %s489, 4
          %s491 = scalar_lea.vmem %s5, %s490
        $region36: #{_encoder_forward.1} parent=31 // pred_fallthru
          _
        // Predicated region
        $region37: #{_encoder_forward.1} parent=31 // pred_check
          %p492 = pneg %p166
        $region38: #{_encoder_forward.1} parent=31 // pred_check_branch
          %494 = sbr.rel (%p492) target = $region40
        $region39: #{_encoder_forward.1} parent=31 // pred_region
          %p495 = scmp.lt.s32.totalorder %s36, 1
          %s496 = scalar_select %p495, %s36, 1
          %s497 = smul.addr %s496, 3
          %s498 = scalar_lea.vmem %s6, %s497
        $region40: #{_encoder_forward.1} parent=31 // pred_fallthru
          _
        // Predicated region
        $region41: #{_encoder_forward.1} parent=31 // pred_check
          %p499 = pneg %p192
        $region42: #{_encoder_forward.1} parent=31 // pred_check_branch
          %501 = sbr.rel (%p499) target = $region44
        $region43: #{_encoder_forward.1} parent=31 // pred_region
          %s502 = sand.u32 %s182, 1
          %s503 = scalar_lea.sflag [#allocation6], %s502
          %s504 = sand.u32 %s182, 1
          %s505 = smul.addr %s504, 64
          %s506 = scalar_lea.vmem [#allocation5], %s505
          %s508 = ssub.s32 1024, 1024
          %509 = vsyncadd %s503, %s508
          %s510 = smul.addr %s36, 16
          %s511 = smul.addr %s510, 64
          %s512 = scalar_lea.hbm %s7, %s511
          %s513 = sshll.u32 %s506, 4
          %s514 = int_to_ptr.vmem [resolvable:$true] %s513
          %519 = dma.hbm_to_vmem [thread:$0]  %s512, 1024, %s514, %s503, 64, 64, 4
        $region44: #{_encoder_forward.1} parent=31 // pred_fallthru
          _
        // Predicated region
        $region45: #{_encoder_forward.1} parent=31 // pred_check
          %p520 = pneg %p218
        $region46: #{_encoder_forward.1} parent=31 // pred_check_branch
          %522 = sbr.rel (%p520) target = $region48
        $region47: #{_encoder_forward.1} parent=31 // pred_region
          %p523 = scmp.lt.s32.totalorder %s36, 1
          %s524 = scalar_select %p523, %s36, 1
          %s525 = scalar_lea.vmem %s8, %s524
        $region48: #{_encoder_forward.1} parent=31 // pred_fallthru
          _
        // Predicated region
        $region49: #{_encoder_forward.1} parent=31 // pred_check
          %p526 = pneg %p244
        $region50: #{_encoder_forward.1} parent=31 // pred_check_branch
          %528 = sbr.rel (%p526) target = $region52
        $region51: #{_encoder_forward.1} parent=31 // pred_region
          %p529 = scmp.lt.s32.totalorder %s36, 1
          %s530 = scalar_select %p529, %s36, 1
          %s531 = scalar_lea.vmem %s9, %s530
        $region52: #{_encoder_forward.1} parent=31 // pred_fallthru
          _
        // Predicated region
        $region53: #{_encoder_forward.1} parent=31 // pred_check
          %p532 = pneg %p270
        $region54: #{_encoder_forward.1} parent=31 // pred_check_branch
          %534 = sbr.rel (%p532) target = $region56
        $region55: #{_encoder_forward.1} parent=31 // pred_region
          %p535 = scmp.lt.s32.totalorder %s36, 1
          %s536 = scalar_select %p535, %s36, 1
          %s537 = scalar_lea.vmem %s10, %s536
        $region56: #{_encoder_forward.1} parent=31 // pred_fallthru
          _
        // Predicated region
        $region57: #{_encoder_forward.1} parent=31 // pred_check
          %p538 = pneg %p296
        $region58: #{_encoder_forward.1} parent=31 // pred_check_branch
          %540 = sbr.rel (%p538) target = $region60
        $region59: #{_encoder_forward.1} parent=31 // pred_region
          %s541 = sand.u32 %s36, 1
          %s542 = scalar_lea.sflag [#allocation9], %s541
          %s543 = sand.u32 %s286, 1
          %s544 = smul.addr %s543, 64
          %s545 = scalar_lea.vmem [#allocation8], %s544
          %s547 = ssub.s32 1024, 1024
          %548 = vsyncadd %s542, %s547
          %s549 = smul.addr %s36, 16
          %s550 = smul.addr %s549, 64
          %s551 = scalar_lea.hbm %s11, %s550
          %s552 = sshll.u32 %s545, 4
          %s553 = int_to_ptr.vmem [resolvable:$true] %s552
          %558 = dma.hbm_to_vmem [thread:$0]  %s551, 1024, %s553, %s542, 64, 64, 4
        $region60: #{_encoder_forward.1} parent=31 // pred_fallthru
          _
        // Predicated region
        $region61: #{_encoder_forward.1} parent=31 // pred_check
          %p559 = pneg %p322
        $region62: #{_encoder_forward.1} parent=31 // pred_check_branch
          %561 = sbr.rel (%p559) target = $region64
        $region63: #{_encoder_forward.1} parent=31 // pred_region
          %p562 = scmp.lt.s32.totalorder %s36, 1
          %s563 = scalar_select %p562, %s36, 1
          %s564 = scalar_lea.vmem %s12, %s563
        $region64: #{_encoder_forward.1} parent=31 // pred_fallthru
          _
        // Predicated region
        $region65: #{_encoder_forward.1} parent=31 // pred_check
          %p565 = pneg %p348
        $region66: #{_encoder_forward.1} parent=31 // pred_check_branch
          %567 = sbr.rel (%p565) target = $region68
        $region67: #{_encoder_forward.1} parent=31 // pred_region
          %s568 = sand.u32 %s36, 1
          %s569 = scalar_lea.sflag [#allocation9], %s568
          %s570 = sand.u32 %s338, 1
          %s571 = smul.addr %s570, 64
          %s572 = scalar_lea.vmem [#allocation10], %s571
          %s574 = ssub.s32 1024, 1024
          %575 = vsyncadd %s569, %s574
          %s576 = smul.addr %s36, 16
          %s577 = smul.addr %s576, 64
          %s578 = scalar_lea.hbm %s13, %s577
          %s579 = sshll.u32 %s572, 4
          %s580 = int_to_ptr.vmem [resolvable:$true] %s579
          %585 = dma.hbm_to_vmem [thread:$0]  %s578, 1024, %s580, %s569, 64, 64, 4
        $region68: #{_encoder_forward.1} parent=31 // pred_fallthru
          _
        // Predicated region
        $region69: #{_encoder_forward.1} parent=31 // pred_check
          %p586 = pneg %p374
        $region70: #{_encoder_forward.1} parent=31 // pred_check_branch
          %588 = sbr.rel (%p586) target = $region72
        $region71: #{_encoder_forward.1} parent=31 // pred_region
          %p589 = scmp.lt.s32.totalorder %s36, 1
          %s590 = scalar_select %p589, %s36, 1
          %s591 = scalar_lea.vmem %s14, %s590
        $region72: #{_encoder_forward.1} parent=31 // pred_fallthru
          _
        // Predicated region
        $region73: #{_encoder_forward.1} parent=31 // pred_check
          %p592 = pneg %p400
        $region74: #{_encoder_forward.1} parent=31 // pred_check_branch
          %594 = sbr.rel (%p592) target = $region76
        $region75: #{_encoder_forward.1} parent=31 // pred_region
          %p595 = scmp.lt.s32.totalorder %s36, 1
          %s596 = scalar_select %p595, %s36, 1
          %s597 = scalar_lea.vmem %s15, %s596
        $region76: #{_encoder_forward.1} parent=31 // pred_fallthru
          _
        // Predicated region
        $region77: #{_encoder_forward.1} parent=31 // pred_check
          %p598 = pneg %p426
        $region78: #{_encoder_forward.1} parent=31 // pred_check_branch
          %600 = sbr.rel (%p598) target = $region80
        $region79: #{_encoder_forward.1} parent=31 // pred_region
          %p601 = scmp.lt.s32.totalorder %s36, 1
          %s602 = scalar_select %p601, %s36, 1
          %s603 = scalar_lea.vmem %s16, %s602
        $region80: #{_encoder_forward.1} parent=31 // pred_fallthru
          _
      $region32: #{_encoder_forward.1} parent=5 // pred_fallthru
        _
      %p604 = scmp.le.s32.totalorder 1, %s36
      %p605 = scmp.lt.s32.totalorder %s36, 3
      %p606 = pnand %p604, %p605
      %p607 = pneg %p606
      // Predicated region
      $region81: #{_encoder_forward.1} parent=5 // pred_check
        _
      $region82: #{_encoder_forward.1} parent=5 // pred_check_branch
        %609 = sbr.rel (%p606) target = $region84
      $region83: #{_encoder_forward.1} parent=5 // pred_region
        %s610 = ssub.s32 %s36, 1
        %s611 = sand.u32 %s185, 1
        %s612 = scalar_lea.sflag [#allocation6], %s611
        %s613 = sand.u32 %s185, 1
        %s614 = smul.addr %s613, 64
        %s615 = scalar_lea.vmem [#allocation5], %s614
        // Predicated region
        $region85: #{_encoder_forward.1} parent=83 // pred_check
          %p616 = pneg %p198
        $region86: #{_encoder_forward.1} parent=83 // pred_check_branch
          %618 = sbr.rel (%p616) target = $region88
        $region87: #{_encoder_forward.1} parent=83 // pred_region
          %619 = dma.done %s612, 1024
        $region88: #{_encoder_forward.1} parent=83 // pred_fallthru
          _
        %s620 = sand.u32 %s41, 1
        %s621 = scalar_lea.sflag [#allocation9], %s620
        %s622 = sand.u32 %s289, 1
        %s623 = smul.addr %s622, 64
        %s624 = scalar_lea.vmem [#allocation8], %s623
        // Predicated region
        $region89: #{_encoder_forward.1} parent=83 // pred_check
          %p625 = pneg %p302
        $region90: #{_encoder_forward.1} parent=83 // pred_check_branch
          %627 = sbr.rel (%p625) target = $region92
        $region91: #{_encoder_forward.1} parent=83 // pred_region
          %628 = dma.done %s621, 1024
        $region92: #{_encoder_forward.1} parent=83 // pred_fallthru
          _
        %s629 = sand.u32 %s41, 1
        %s630 = scalar_lea.sflag [#allocation9], %s629
        %s631 = sand.u32 %s341, 1
        %s632 = smul.addr %s631, 64
        %s633 = scalar_lea.vmem [#allocation10], %s632
        // Predicated region
        $region93: #{_encoder_forward.1} parent=83 // pred_check
          %p634 = pneg %p354
        $region94: #{_encoder_forward.1} parent=83 // pred_check_branch
          %636 = sbr.rel (%p634) target = $region96
        $region95: #{_encoder_forward.1} parent=83 // pred_region
          %637 = dma.done %s630, 1024
        $region96: #{_encoder_forward.1} parent=83 // pred_fallthru
          _
        %p638 = pneg %p57
        %p639 = pneg %p54
        %p640 = pneg %p78
        %p641 = pneg %p75
        %p642 = pneg %p99
        %p643 = pneg %p96
        %p644 = pneg %p120
        %p645 = pneg %p117
        %p646 = scmp.lt.s32.totalorder %s41, 1
        %s647 = scalar_select %p646, %s41, 1
        %s648 = smul.addr %s647, 48
        %s649 = smul.addr %s648, 4
        %s650 = scalar_lea.vmem %s5, %s649
        %p651 = pneg %p146
        %p652 = pneg %p143
        %p653 = scmp.lt.s32.totalorder %s41, 1
        %s654 = scalar_select %p653, %s41, 1
        %s655 = smul.addr %s654, 3
        %s656 = scalar_lea.vmem %s6, %s655
        %p657 = pneg %p172
        %p658 = pneg %p169
        %s659 = sand.u32 %s185, 1
        %s660 = scalar_lea.sflag [#allocation6], %s659
        %s661 = sand.u32 %s185, 1
        %s662 = smul.addr %s661, 64
        %s663 = scalar_lea.vmem [#allocation5], %s662
        %p664 = pneg %p198
        %p665 = pneg %p195
        %p666 = scmp.lt.s32.totalorder %s41, 1
        %s667 = scalar_select %p666, %s41, 1
        %s668 = scalar_lea.vmem %s8, %s667
        %p669 = pneg %p224
        %p670 = pneg %p221
        %p671 = scmp.lt.s32.totalorder %s41, 1
        %s672 = scalar_select %p671, %s41, 1
        %s673 = scalar_lea.vmem %s9, %s672
        %p674 = pneg %p250
        %p675 = pneg %p247
        %p676 = scmp.lt.s32.totalorder %s41, 1
        %s677 = scalar_select %p676, %s41, 1
        %s678 = scalar_lea.vmem %s10, %s677
        %p679 = pneg %p276
        %p680 = pneg %p273
        %s681 = sand.u32 %s41, 1
        %s682 = scalar_lea.sflag [#allocation9], %s681
        %s683 = sand.u32 %s289, 1
        %s684 = smul.addr %s683, 64
        %s685 = scalar_lea.vmem [#allocation8], %s684
        %p686 = pneg %p302
        %p687 = pneg %p299
        %p688 = scmp.lt.s32.totalorder %s41, 1
        %s689 = scalar_select %p688, %s41, 1
        %s690 = scalar_lea.vmem %s12, %s689
        %p691 = pneg %p328
        %p692 = pneg %p325
        %s693 = sand.u32 %s41, 1
        %s694 = scalar_lea.sflag [#allocation9], %s693
        %s695 = sand.u32 %s341, 1
        %s696 = smul.addr %s695, 64
        %s697 = scalar_lea.vmem [#allocation10], %s696
        %p698 = pneg %p354
        %p699 = pneg %p351
        %p700 = scmp.lt.s32.totalorder %s41, 1
        %s701 = scalar_select %p700, %s41, 1
        %s702 = scalar_lea.vmem %s14, %s701
        %p703 = pneg %p380
        %p704 = pneg %p377
        %p705 = scmp.lt.s32.totalorder %s41, 1
        %s706 = scalar_select %p705, %s41, 1
        %s707 = scalar_lea.vmem %s15, %s706
        %p708 = pneg %p406
        %p709 = pneg %p403
        %p710 = scmp.lt.s32.totalorder %s41, 1
        %s711 = scalar_select %p710, %s41, 1
        %s712 = scalar_lea.vmem %s16, %s711
        %p713 = pneg %p432
        %p714 = pneg %p429
        %p715 = pneg %p453
        %p716 = pneg %p450
        %p717 = scmp.lt.s32.totalorder %s41, 1
        %s718 = scalar_select %p717, %s41, 1
        %s719 = smul.addr %s718, 48
        %s720 = smul.addr %s719, 4
        %s721 = scalar_lea.vmem %s5, %s720
        %p722 = scmp.lt.s32.totalorder %s41, 1
        %s723 = scalar_select %p722, %s41, 1
        %s724 = smul.addr %s723, 3
        %s725 = scalar_lea.vmem %s6, %s724
        %p726 = scmp.lt.s32.totalorder %s41, 1
        %s727 = scalar_select %p726, %s41, 1
        %s728 = scalar_lea.vmem %s8, %s727
        %p729 = scmp.lt.s32.totalorder %s41, 1
        %s730 = scalar_select %p729, %s41, 1
        %s731 = scalar_lea.vmem %s9, %s730
        %p732 = scmp.lt.s32.totalorder %s41, 1
        %s733 = scalar_select %p732, %s41, 1
        %s734 = scalar_lea.vmem %s10, %s733
        %p735 = scmp.lt.s32.totalorder %s41, 1
        %s736 = scalar_select %p735, %s41, 1
        %s737 = scalar_lea.vmem %s12, %s736
        %p738 = scmp.lt.s32.totalorder %s41, 1
        %s739 = scalar_select %p738, %s41, 1
        %s740 = scalar_lea.vmem %s14, %s739
        %p741 = scmp.lt.s32.totalorder %s41, 1
        %s742 = scalar_select %p741, %s41, 1
        %s743 = scalar_lea.vmem %s15, %s742
        %p744 = scmp.lt.s32.totalorder %s41, 1
        %s745 = scalar_select %p744, %s41, 1
        %s746 = scalar_lea.vmem %s16, %s745
        %p748 = scmp.eq.s32.totalorder %s41, 0
        // Predicated region
        $region97: #{_encoder_forward.1} parent=83 // pred_check
          %p749 = pneg %p748
        $region98: #{_encoder_forward.1} parent=83 // pred_check_branch
          %751 = sbr.rel (%p749) target = $region100
        $region99: #{_encoder_forward.1} parent=83 // pred_region
          %v752 = vld [vmem:[%s1] sm:$0xff]
          %v753 = vld [vmem:[%s1 + $0x8] sm:$0xff]
          %v754 = vld [vmem:[%s1 + $0x10] sm:$0xff]
          %v755 = vld [vmem:[%s1 + $0x18] sm:$0xff]
          %v756 = vld [vmem:[%s3] sm:$0x1]
          %v757 = vld [vmem:[%s4] sm:$0x1]
          %758 = vadd.xlane.f32.xlu0 %v752
          %v759 = vpop.xlane.xlu0 %758
          %760 = vadd.xlane.f32.xlu0 %v753
          %v761 = vpop.xlane.xlu0 %760
          %762 = vadd.xlane.f32.xlu0 %v754
          %v763 = vpop.xlane.xlu0 %762
          %764 = vadd.xlane.f32.xlu0 %v755
          %v765 = vpop.xlane.xlu0 %764
          %v766 = vmul.f32 %v752, %v752
          %v767 = vmul.f32 %v753, %v753
          %v768 = vmul.f32 %v754, %v754
          %v769 = vmul.f32 %v755, %v755
          %770 = vadd.xlane.f32.xlu0 %v766
          %v771 = vpop.xlane.xlu0 %770
          %772 = vadd.xlane.f32.xlu0 %v767
          %v773 = vpop.xlane.xlu0 %772
          %774 = vadd.xlane.f32.xlu0 %v768
          %v775 = vpop.xlane.xlu0 %774
          %776 = vadd.xlane.f32.xlu0 %v769
          %v777 = vpop.xlane.xlu0 %776
          %v778 = vmul.f32 %v759, 0.03125
          %v779 = vmul.f32 %v761, 0.03125
          %v780 = vmul.f32 %v763, 0.03125
          %v781 = vmul.f32 %v765, 0.03125
          %v782 = vmul.f32 %v771, 0.03125
          %v783 = vmul.f32 %v773, 0.03125
          %v784 = vmul.f32 %v775, 0.03125
          %v785 = vmul.f32 %v777, 0.03125
          %v786 = vmul.f32 %v778, %v778
          %v787 = vmul.f32 %v779, %v779
          %v788 = vmul.f32 %v780, %v780
          %v789 = vmul.f32 %v781, %v781
          %v790 = vsub.f32 %v782, %v786
          %v791 = vsub.f32 %v783, %v787
          %v792 = vsub.f32 %v784, %v788
          %v793 = vsub.f32 %v785, %v789
          %v794 = vadd.f32 %v790, 1e-05
          %v795 = vadd.f32 %v791, 1e-05
          %v796 = vadd.f32 %v792, 1e-05
          %v797 = vadd.f32 %v793, 1e-05
          %v798 = vrsqrt.pop %v794
          %v799 = vrsqrt.pop %v795
          %v800 = vrsqrt.pop %v796
          %v801 = vrsqrt.pop %v797
          %v802 = vsub.f32 %v752, %v778
          %v803 = vsub.f32 %v753, %v779
          %v804 = vsub.f32 %v754, %v780
          %v805 = vsub.f32 %v755, %v781
          %v806 = vmul.f32 %v802, %v798
          %v807 = vmul.f32 %v803, %v799
          %v808 = vmul.f32 %v804, %v800
          %v809 = vmul.f32 %v805, %v801
          %v811 = vlaneseq
          %v812 = vshrl.u32 %v811, 7
          %v813 = vsub.s32 0, %v812
          %v814 = vrot.slane %v756, %v813
          %v816 = vmul.f32 %v806, %v814
          %v817 = vmul.f32 %v807, %v814
          %v818 = vmul.f32 %v808, %v814
          %v819 = vmul.f32 %v809, %v814
          %v821 = vlaneseq
          %v822 = vshrl.u32 %v821, 7
          %v823 = vsub.s32 0, %v822
          %v824 = vrot.slane %v757, %v823
          %v826 = vadd.f32 %v816, %v824
          %v827 = vadd.f32 %v817, %v824
          %v828 = vadd.f32 %v818, %v824
          %v829 = vadd.f32 %v819, %v824
          %830 = vst [vmem:[#allocation2] sm:$0xff] %v826
          %831 = vst [vmem:[#allocation2 + $0x8] sm:$0xff] %v827
          %832 = vst [vmem:[#allocation2 + $0x10] sm:$0xff] %v828
          %833 = vst [vmem:[#allocation2 + $0x18] sm:$0xff] %v829
        $region100: #{_encoder_forward.1} parent=83 // pred_fallthru
          _
        %v834 = vld [vmem:[#allocation2] sm:$0xff]
        %v835 = vld [vmem:[#allocation2 + $0x8] sm:$0xff]
        %v836 = vld [vmem:[#allocation2 + $0x10] sm:$0xff]
        %v837 = vld [vmem:[#allocation2 + $0x18] sm:$0xff]
        %v838 = vpack.c.bf16 %v835, %v834
        %v839 = vpack.c.bf16 %v837, %v836
        %v840 = vld [vmem:[%s721] sm:$0xff]
        %v841 = vld [vmem:[%s721 + $0x8] sm:$0xf]
        %v842 = vld [vmem:[%s721 + $0xc] sm:$0xff]
        %v843 = vld [vmem:[%s721 + $0x14] sm:$0xf]
        %v844 = vld [vmem:[%s721 + $0x18] sm:$0xff]
        %v845 = vld [vmem:[%s721 + $0x20] sm:$0xf]
        %v846 = vld [vmem:[%s721 + $0x24] sm:$0xff]
        %v847 = vld [vmem:[%s721 + $0x2c] sm:$0xf]
        %v848 = vld [vmem:[%s721 + $0x30] sm:$0xff]
        %v849 = vld [vmem:[%s721 + $0x38] sm:$0xf]
        %v850 = vld [vmem:[%s721 + $0x3c] sm:$0xff]
        %v851 = vld [vmem:[%s721 + $0x44] sm:$0xf]
        %v852 = vld [vmem:[%s721 + $0x48] sm:$0xff]
        %v853 = vld [vmem:[%s721 + $0x50] sm:$0xf]
        %v854 = vld [vmem:[%s721 + $0x54] sm:$0xff]
        %v855 = vld [vmem:[%s721 + $0x5c] sm:$0xf]
        %v856 = vld [vmem:[%s721 + $0x60] sm:$0xff]
        %v857 = vld [vmem:[%s721 + $0x68] sm:$0xf]
        %v858 = vld [vmem:[%s721 + $0x6c] sm:$0xff]
        %v859 = vld [vmem:[%s721 + $0x74] sm:$0xf]
        %v860 = vld [vmem:[%s721 + $0x78] sm:$0xff]
        %v861 = vld [vmem:[%s721 + $0x80] sm:$0xf]
        %v862 = vld [vmem:[%s721 + $0x84] sm:$0xff]
        %v863 = vld [vmem:[%s721 + $0x8c] sm:$0xf]
        %v864 = vld [vmem:[%s721 + $0x90] sm:$0xff]
        %v865 = vld [vmem:[%s721 + $0x98] sm:$0xf]
        %v866 = vld [vmem:[%s721 + $0x9c] sm:$0xff]
        %v867 = vld [vmem:[%s721 + $0xa4] sm:$0xf]
        %v868 = vld [vmem:[%s721 + $0xa8] sm:$0xff]
        %v869 = vld [vmem:[%s721 + $0xb0] sm:$0xf]
        %v870 = vld [vmem:[%s721 + $0xb4] sm:$0xff]
        %v871 = vld [vmem:[%s721 + $0xbc] sm:$0xf]
        %v872 = vld [vmem:[%s725] sm:$0x7]
        %v874 = vlaneseq
        %v875 = vshrl.u32 %v874, 7
        %v876 = vsub.s32 0, %v875
        %v877 = vrot.slane %v872, %v876
        %v878 = vlaneseq
        %v879 = vshrl.u32 %v878, 7
        %v880 = vsub.s32 1, %v879
        %v881 = vrot.slane %v872, %v880
        %v882 = vlaneseq
        %v883 = vshrl.u32 %v882, 7
        %v884 = vsub.s32 2, %v883
        %v885 = vrot.slane %v872, %v884
        %v921 = vunpack.c.l.b16 %v840
        %v922 = vunpack.c.h.b16 %v840
        %v923 = vunpack.c.l.b16 %v841
        %v924 = vunpack.c.l.b16 %v842
        %v925 = vunpack.c.h.b16 %v842
        %v926 = vunpack.c.l.b16 %v843
        %v927 = vunpack.c.l.b16 %v844
        %v928 = vunpack.c.h.b16 %v844
        %v929 = vunpack.c.l.b16 %v845
        %v930 = vunpack.c.l.b16 %v846
        %v931 = vunpack.c.h.b16 %v846
        %v932 = vunpack.c.l.b16 %v847
        %v933 = vunpack.c.l.b16 %v848
        %v934 = vunpack.c.h.b16 %v848
        %v935 = vunpack.c.l.b16 %v849
        %v936 = vunpack.c.l.b16 %v850
        %v937 = vunpack.c.h.b16 %v850
        %v938 = vunpack.c.l.b16 %v851
        %v939 = vunpack.c.l.b16 %v852
        %v940 = vunpack.c.h.b16 %v852
        %v941 = vunpack.c.l.b16 %v853
        %v942 = vunpack.c.l.b16 %v854
        %v943 = vunpack.c.h.b16 %v854
        %v944 = vunpack.c.l.b16 %v855
        %v945 = vunpack.c.l.b16 %v856
        %v946 = vunpack.c.h.b16 %v856
        %v947 = vunpack.c.l.b16 %v857
        %v948 = vunpack.c.l.b16 %v858
        %v949 = vunpack.c.h.b16 %v858
        %v950 = vunpack.c.l.b16 %v859
        %v951 = vunpack.c.l.b16 %v860
        %v952 = vunpack.c.h.b16 %v860
        %v953 = vunpack.c.l.b16 %v861
        %v954 = vunpack.c.l.b16 %v862
        %v955 = vunpack.c.h.b16 %v862
        %v956 = vunpack.c.l.b16 %v863
        %v957 = vunpack.c.l.b16 %v864
        %v958 = vunpack.c.h.b16 %v864
        %v959 = vunpack.c.l.b16 %v865
        %v960 = vunpack.c.l.b16 %v866
        %v961 = vunpack.c.h.b16 %v866
        %v962 = vunpack.c.l.b16 %v867
        %v963 = vunpack.c.l.b16 %v868
        %v964 = vunpack.c.h.b16 %v868
        %v965 = vunpack.c.l.b16 %v869
        %v966 = vunpack.c.l.b16 %v870
        %v967 = vunpack.c.h.b16 %v870
        %v968 = vunpack.c.l.b16 %v871
        %v969 = vpack.c.b16 %v924, %v921
        %v970 = vpack.c.b16 %v925, %v922
        %v971 = vpack.c.b16 %v926, %v923
        %v972 = vpack.c.b16 %v930, %v927
        %v973 = vpack.c.b16 %v931, %v928
        %v974 = vpack.c.b16 %v932, %v929
        %v975 = vpack.c.b16 %v936, %v933
        %v976 = vpack.c.b16 %v937, %v934
        %v977 = vpack.c.b16 %v938, %v935
        %v978 = vpack.c.b16 %v942, %v939
        %v979 = vpack.c.b16 %v943, %v940
        %v980 = vpack.c.b16 %v944, %v941
        %v981 = vpack.c.b16 %v948, %v945
        %v982 = vpack.c.b16 %v949, %v946
        %v983 = vpack.c.b16 %v950, %v947
        %v984 = vpack.c.b16 %v954, %v951
        %v985 = vpack.c.b16 %v955, %v952
        %v986 = vpack.c.b16 %v956, %v953
        %v987 = vpack.c.b16 %v960, %v957
        %v988 = vpack.c.b16 %v961, %v958
        %v989 = vpack.c.b16 %v962, %v959
        %v990 = vpack.c.b16 %v966, %v963
        %v991 = vpack.c.b16 %v967, %v964
        %v992 = vpack.c.b16 %v968, %v965
        %1017 = vmatprep.subr.bf16.mxu0 %v991
        %1018 = vmatpush1.bf16.msra.mxu0 %v990
        %1019 = vmatprep.subr.bf16.mxu0 %v988
        %1020 = vmatpush1.bf16.msra.mxu0 %v987
        %1021 = vmatprep.subr.bf16.mxu0 %v985
        %1022 = vmatpush1.bf16.msra.mxu0 %v984
        %1023 = vmatprep.subr.bf16.mxu0 %v982
        %1024 = vmatpush1.bf16.msra.mxu0 %v981
        %1025 = vmatprep.subr.bf16.mxu0 %v979
        %1026 = vmatpush1.bf16.msra.mxu0 %v978
        %1027 = vmatprep.subr.bf16.mxu0 %v976
        %1028 = vmatpush1.bf16.msra.mxu0 %v975
        %1029 = vmatprep.subr.bf16.mxu0 %v973
        %1030 = vmatpush1.bf16.msra.mxu0 %v972
        %1031 = vmatprep.subr.bf16.mxu0 %v970
        %1032 = vmatpush1.bf16.msra.mxu0 %v969
        %1033 = vmatprep.subr.bf16.mxu0 0
        %1034 = vmatpush2.bf16.msra.mxu0 0
        %1035 = vmatprep.subr.bf16.mxu0 0
        %1036 = vmatpush2.bf16.msra.mxu0 0
        %1037 = vmatprep.subr.bf16.mxu0 0
        %1038 = vmatpush2.bf16.msra.mxu0 0
        %1039 = vmatprep.subr.bf16.mxu0 0
        %1040 = vmatpush2.bf16.msra.mxu0 0
        %1041 = vmatprep.subr.bf16.mxu0 0
        %1042 = vmatpush2.bf16.msra.mxu0 0
        %1043 = vmatprep.subr.bf16.mxu0 0
        %1044 = vmatpush2.bf16.msra.mxu0 0
        %1045 = vmatprep.subr.bf16.mxu0 0
        %1046 = vmatpush2.bf16.msra.mxu0 0
        %1047 = vmatprep.subr.bf16.mxu0 0
        %1048 = vmatpush2.bf16.msra.mxu0 0
        %1049 = vmatprep.mubr.bf16.mxu0 0
        %1050 = vmatmul.mubr.bf16.gmra.mxu0 %v838
        %v1051 = vpop.f32.mrf.mxu0
        %v1052 = vadd.f32 %v877, %v1051
        %v1053 = vpop.f32.mrf.mxu0
        %v1054 = vadd.f32 %v881, %v1053
        %v1055 = vpop.f32.mrf.mxu0
        %v1056 = vadd.f32 %v877, %v1055
        %v1057 = vpop.f32.mrf.mxu0
        %v1058 = vadd.f32 %v881, %v1057
        %1059 = vmatprep.mubr.bf16.mxu0 0
        %1060 = vmatmul.mubr.bf16.gmra.mxu0 %v839
        %v1061 = vpop.f32.mrf.mxu0
        %v1062 = vadd.f32 %v877, %v1061
        %v1063 = vpop.f32.mrf.mxu0
        %v1064 = vadd.f32 %v881, %v1063
        %v1065 = vpop.f32.mrf.mxu0
        %v1066 = vadd.f32 %v877, %v1065
        %v1067 = vpop.f32.mrf.mxu0
        %v1068 = vadd.f32 %v881, %v1067
        %1069 = vdwg.mxu0
        %1070 = vmatprep.subr.bf16.mxu0 0
        %1071 = vmatpush1.bf16.msra.mxu0 %v992
        %1072 = vmatprep.subr.bf16.mxu0 0
        %1073 = vmatpush1.bf16.msra.mxu0 %v989
        %1074 = vmatprep.subr.bf16.mxu0 0
        %1075 = vmatpush1.bf16.msra.mxu0 %v986
        %1076 = vmatprep.subr.bf16.mxu0 0
        %1077 = vmatpush1.bf16.msra.mxu0 %v983
        %1078 = vmatprep.subr.bf16.mxu0 0
        %1079 = vmatpush1.bf16.msra.mxu0 %v980
        %1080 = vmatprep.subr.bf16.mxu0 0
        %1081 = vmatpush1.bf16.msra.mxu0 %v977
        %1082 = vmatprep.subr.bf16.mxu0 0
        %1083 = vmatpush1.bf16.msra.mxu0 %v974
        %1084 = vmatprep.subr.bf16.mxu0 0
        %1085 = vmatpush1.bf16.msra.mxu0 %v971
        %1086 = vmatprep.subr.bf16.mxu0 0
        %1087 = vmatpush2.bf16.msra.mxu0 0
        %1088 = vmatprep.subr.bf16.mxu0 0
        %1089 = vmatpush2.bf16.msra.mxu0 0
        %1090 = vmatprep.subr.bf16.mxu0 0
        %1091 = vmatpush2.bf16.msra.mxu0 0
        %1092 = vmatprep.subr.bf16.mxu0 0
        %1093 = vmatpush2.bf16.msra.mxu0 0
        %1094 = vmatprep.subr.bf16.mxu0 0
        %1095 = vmatpush2.bf16.msra.mxu0 0
        %1096 = vmatprep.subr.bf16.mxu0 0
        %1097 = vmatpush2.bf16.msra.mxu0 0
        %1098 = vmatprep.subr.bf16.mxu0 0
        %1099 = vmatpush2.bf16.msra.mxu0 0
        %1100 = vmatprep.subr.bf16.mxu0 0
        %1101 = vmatpush2.bf16.msra.mxu0 0
        %1102 = vmatprep.mubr.bf16.mxu0 0
        %1103 = vmatmul.mubr.bf16.gmra.mxu0 %v838
        %v1104 = vpop.f32.mrf.mxu0
        %v1105 = vadd.f32 %v885, %v1104
        %v1106 = vpop.f32.mrf.mxu0
        %v1107 = vpop.f32.mrf.mxu0
        %v1108 = vadd.f32 %v885, %v1107
        %v1109 = vpop.f32.mrf.mxu0
        %1110 = vmatprep.mubr.bf16.mxu0 0
        %1111 = vmatmul.mubr.bf16.gmra.mxu0 %v839
        %v1112 = vpop.f32.mrf.mxu0
        %v1113 = vadd.f32 %v885, %v1112
        %v1114 = vpop.f32.mrf.mxu0
        %v1115 = vpop.f32.mrf.mxu0
        %v1116 = vadd.f32 %v885, %v1115
        %v1117 = vpop.f32.mrf.mxu0
        %1118 = vdwg.mxu0
        %v1119 = vpack.c.bf16 %v1056, %v1052
        %v1120 = vpack.c.bf16 %v1066, %v1062
        %v1121 = vpack.c.bf16 %v1058, %v1054
        %v1122 = vpack.c.bf16 %v1068, %v1064
        %v1123 = vpack.c.bf16 %v1108, %v1105
        %v1124 = vpack.c.bf16 %v1116, %v1113
        %1125 = vmatprep.subr.bf16.mxu0 0
        %1126 = vmatpush1.bf16.xpose.msra.mxu0 0
        %1127 = vmatprep.subr.bf16.mxu0 0
        %1128 = vmatpush1.bf16.xpose.msra.mxu0 0
        %1129 = vmatprep.subr.bf16.mxu0 0
        %1130 = vmatpush1.bf16.xpose.msra.mxu0 0
        %1131 = vmatprep.subr.bf16.mxu0 0
        %1132 = vmatpush1.bf16.xpose.msra.mxu0 0
        %1133 = vmatprep.subr.bf16.mxu0 0
        %1134 = vmatpush1.bf16.xpose.msra.mxu0 0
        %1135 = vmatprep.subr.bf16.mxu0 0
        %1136 = vmatpush1.bf16.xpose.msra.mxu0 0
        %1137 = vmatprep.subr.bf16.mxu0 0
        %1138 = vmatpush1.bf16.xpose.msra.mxu0 0
        %1139 = vmatprep.subr.bf16.mxu0 0
        %1140 = vmatpush1.bf16.xpose.msra.mxu0 %v1121
        %1141 = vmatprep.subr.bf16.mxu0 0
        %1142 = vmatpush2.bf16.xpose.msra.mxu0 0
        %1143 = vmatprep.subr.bf16.mxu0 0
        %1144 = vmatpush2.bf16.xpose.msra.mxu0 0
        %1145 = vmatprep.subr.bf16.mxu0 0
        %1146 = vmatpush2.bf16.xpose.msra.mxu0 0
        %1147 = vmatprep.subr.bf16.mxu0 0
        %1148 = vmatpush2.bf16.xpose.msra.mxu0 0
        %1149 = vmatprep.subr.bf16.mxu0 0
        %1150 = vmatpush2.bf16.xpose.msra.mxu0 0
        %1151 = vmatprep.subr.bf16.mxu0 0
        %1152 = vmatpush2.bf16.xpose.msra.mxu0 0
        %1153 = vmatprep.subr.bf16.mxu0 0
        %1154 = vmatpush2.bf16.xpose.msra.mxu0 0
        %1155 = vmatprep.subr.bf16.mxu0 0
        %1156 = vmatpush2.bf16.xpose.msra.mxu0 0
        %1157 = vmatprep.mubr.bf16.mxu0 0
        %1158 = vmatmul.mubr.bf16.gmra.mxu0 %v1119
        %v1159 = vpop.f32.mrf.mxu0
        %v1160 = vadd.f32 0.0, %v1159
        %v1161 = vpop.f32.mrf.mxu0
        %v1162 = vpop.f32.mrf.mxu0
        %v1163 = vadd.f32 0.0, %v1162
        %v1164 = vpop.f32.mrf.mxu0
        %1165 = vdwg.mxu0
        %1166 = vmatprep.subr.bf16.mxu0 0
        %1167 = vmatpush1.bf16.xpose.msra.mxu0 0
        %1168 = vmatprep.subr.bf16.mxu0 0
        %1169 = vmatpush1.bf16.xpose.msra.mxu0 0
        %1170 = vmatprep.subr.bf16.mxu0 0
        %1171 = vmatpush1.bf16.xpose.msra.mxu0 0
        %1172 = vmatprep.subr.bf16.mxu0 0
        %1173 = vmatpush1.bf16.xpose.msra.mxu0 0
        %1174 = vmatprep.subr.bf16.mxu0 0
        %1175 = vmatpush1.bf16.xpose.msra.mxu0 0
        %1176 = vmatprep.subr.bf16.mxu0 0
        %1177 = vmatpush1.bf16.xpose.msra.mxu0 0
        %1178 = vmatprep.subr.bf16.mxu0 0
        %1179 = vmatpush1.bf16.xpose.msra.mxu0 0
        %1180 = vmatprep.subr.bf16.mxu0 0
        %1181 = vmatpush1.bf16.xpose.msra.mxu0 %v1122
        %1182 = vmatprep.subr.bf16.mxu0 0
        %1183 = vmatpush2.bf16.xpose.msra.mxu0 0
        %1184 = vmatprep.subr.bf16.mxu0 0
        %1185 = vmatpush2.bf16.xpose.msra.mxu0 0
        %1186 = vmatprep.subr.bf16.mxu0 0
        %1187 = vmatpush2.bf16.xpose.msra.mxu0 0
        %1188 = vmatprep.subr.bf16.mxu0 0
        %1189 = vmatpush2.bf16.xpose.msra.mxu0 0
        %1190 = vmatprep.subr.bf16.mxu0 0
        %1191 = vmatpush2.bf16.xpose.msra.mxu0 0
        %1192 = vmatprep.subr.bf16.mxu0 0
        %1193 = vmatpush2.bf16.xpose.msra.mxu0 0
        %1194 = vmatprep.subr.bf16.mxu0 0
        %1195 = vmatpush2.bf16.xpose.msra.mxu0 0
        %1196 = vmatprep.subr.bf16.mxu0 0
        %1197 = vmatpush2.bf16.xpose.msra.mxu0 0
        %1198 = vmatprep.mubr.bf16.mxu0 0
        %1199 = vmatmul.mubr.bf16.gmra.mxu0 %v1120
        %v1200 = vpop.f32.mrf.mxu0
        %v1201 = vadd.f32 0.0, %v1200
        %v1202 = vpop.f32.mrf.mxu0
        %v1203 = vpop.f32.mrf.mxu0
        %v1204 = vadd.f32 0.0, %v1203
        %v1205 = vpop.f32.mrf.mxu0
        %1206 = vdwg.mxu0
        %v1207 = vmul.f32 %v1160, 0.17677669
        %v1208 = vmul.f32 %v1163, 0.17677669
        %v1209 = vmul.f32 %v1201, 0.17677669
        %v1210 = vmul.f32 %v1204, 0.17677669
        %v1211 = vld [vmem:[%s2] sm:$0x3]
        %v1214 = vunpack.c.l.s4 1966171168
        %v1215 = vunpack.c.0.s8 %v1214
        %v1216 = vlaneseq
        %v1217 = vshrl.u32 %v1216, 7
        %v1218 = vsub.s32 %v1215, %v1217
        %v1219 = vrot.slane %v1211, %v1218
        %v1220 = vcombine.high %v1219, %v1219
        %v1222 = vunpack.c.l.s4 1966171168
        %v1223 = vunpack.c.0.s8 %v1222
        %v1224 = vlaneseq
        %v1225 = vshrl.u32 %v1224, 7
        %v1226 = vsub.s32 %v1223, %v1225
        %v1227 = vrot.slane %v1219, %v1226
        %v1229 = vunpack.c.l.s4 1966171168
        %v1230 = vunpack.c.0.s8 %v1229
        %v1231 = vlaneseq
        %v1232 = vshrl.u32 %v1231, 7
        %v1233 = vsub.s32 %v1230, %v1232
        %v1234 = vrot.slane %v1220, %v1233
        %v1235 = vlaneseq
        %v1236 = vshrl.u32 %v1235, 7
        %v1237 = vsub.s32 0, %v1236
        %v1238 = vrot.slane %v1227, %v1237
        %v1239 = vlaneseq
        %v1240 = vshrl.u32 %v1239, 7
        %v1241 = vsub.s32 0, %v1240
        %v1242 = vrot.slane %v1234, %v1241
        %v1245 = vadd.f32 %v1207, %v1238
        %v1246 = vadd.f32 %v1208, %v1238
        %v1247 = vadd.f32 %v1209, %v1242
        %v1248 = vadd.f32 %v1210, %v1242
        %vm1249 = vcmask 130048
        %v1250 = vsel %vm1249, %v1245, -inf
        %1251 = vmax.xlane.f32.xlu0 %v1250
        %v1252 = vpop.xlane.xlu0 %1251
        %v1253 = vsel %vm1249, %v1246, -inf
        %1254 = vmax.xlane.f32.xlu0 %v1253
        %v1255 = vpop.xlane.xlu0 %1254
        %v1256 = vsel %vm1249, %v1247, -inf
        %1257 = vmax.xlane.f32.xlu0 %v1256
        %v1258 = vpop.xlane.xlu0 %1257
        %v1259 = vsel %vm1249, %v1248, -inf
        %1260 = vmax.xlane.f32.xlu0 %v1259
        %v1261 = vpop.xlane.xlu0 %1260
        %v1262 = vsub.f32 %v1245, %v1252
        %v1263 = vsub.f32 %v1246, %v1255
        %v1264 = vsub.f32 %v1247, %v1258
        %v1265 = vsub.f32 %v1248, %v1261
        %v1266 = vmul.f32 %v1262, 1.442695
        %v1267 = vpow.pop %v1266
        %v1268 = vmul.f32 %v1263, 1.442695
        %v1269 = vpow.pop %v1268
        %v1270 = vmul.f32 %v1264, 1.442695
        %v1271 = vpow.pop %v1270
        %v1272 = vmul.f32 %v1265, 1.442695
        %v1273 = vpow.pop %v1272
        %v1274 = vsel %vm1249, %v1267, 0.0
        %1275 = vadd.xlane.f32.xlu0 %v1274
        %v1276 = vpop.xlane.xlu0 %1275
        %v1277 = vsel %vm1249, %v1269, 0.0
        %1278 = vadd.xlane.f32.xlu0 %v1277
        %v1279 = vpop.xlane.xlu0 %1278
        %v1280 = vsel %vm1249, %v1271, 0.0
        %1281 = vadd.xlane.f32.xlu0 %v1280
        %v1282 = vpop.xlane.xlu0 %1281
        %v1283 = vsel %vm1249, %v1273, 0.0
        %1284 = vadd.xlane.f32.xlu0 %v1283
        %v1285 = vpop.xlane.xlu0 %1284
        %v1286 = vrcp.pop %v1276
        %v1287 = vrcp.pop %v1279
        %v1288 = vrcp.pop %v1282
        %v1289 = vrcp.pop %v1285
        %v1290 = vmul.f32 %v1267, %v1286
        %v1291 = vmul.f32 %v1269, %v1287
        %v1292 = vmul.f32 %v1271, %v1288
        %v1293 = vmul.f32 %v1273, %v1289
        %v1294 = vpack.c.bf16 %v1291, %v1290
        %v1295 = vpack.c.bf16 %v1293, %v1292
        %v1297 = vsel %vm1249, %v1294, 0
        %1299 = vmatprep.subr.bf16.mxu0 0
        %1300 = vmatpush1.bf16.msra.mxu0 0
        %1301 = vmatprep.subr.bf16.mxu0 0
        %1302 = vmatpush1.bf16.msra.mxu0 0
        %1303 = vmatprep.subr.bf16.mxu0 0
        %1304 = vmatpush1.bf16.msra.mxu0 0
        %1305 = vmatprep.subr.bf16.mxu0 0
        %1306 = vmatpush1.bf16.msra.mxu0 0
        %1307 = vmatprep.subr.bf16.mxu0 0
        %1308 = vmatpush1.bf16.msra.mxu0 0
        %1309 = vmatprep.subr.bf16.mxu0 0
        %1310 = vmatpush1.bf16.msra.mxu0 0
        %1311 = vmatprep.subr.bf16.mxu0 0
        %1312 = vmatpush1.bf16.msra.mxu0 0
        %1313 = vmatprep.subr.bf16.mxu0 0
        %1314 = vmatpush1.bf16.msra.mxu0 %v1123
        %1315 = vmatprep.subr.bf16.mxu0 0
        %1316 = vmatpush2.bf16.msra.mxu0 0
        %1317 = vmatprep.subr.bf16.mxu0 0
        %1318 = vmatpush2.bf16.msra.mxu0 0
        %1319 = vmatprep.subr.bf16.mxu0 0
        %1320 = vmatpush2.bf16.msra.mxu0 0
        %1321 = vmatprep.subr.bf16.mxu0 0
        %1322 = vmatpush2.bf16.msra.mxu0 0
        %1323 = vmatprep.subr.bf16.mxu0 0
        %1324 = vmatpush2.bf16.msra.mxu0 0
        %1325 = vmatprep.subr.bf16.mxu0 0
        %1326 = vmatpush2.bf16.msra.mxu0 0
        %1327 = vmatprep.subr.bf16.mxu0 0
        %1328 = vmatpush2.bf16.msra.mxu0 0
        %1329 = vmatprep.subr.bf16.mxu0 0
        %1330 = vmatpush2.bf16.msra.mxu0 0
        %1331 = vmatprep.mubr.bf16.mxu0 0
        %1332 = vmatmul.mubr.bf16.gmra.mxu0 %v1297
        %v1333 = vpop.f32.mrf.mxu0
        %v1334 = vadd.f32 0.0, %v1333
        %v1335 = vpop.f32.mrf.mxu0
        %v1336 = vpop.f32.mrf.mxu0
        %v1337 = vadd.f32 0.0, %v1336
        %v1338 = vpop.f32.mrf.mxu0
        %1339 = vdwg.mxu0
        %v1341 = vsel %vm1249, %v1295, 0
        %1343 = vmatprep.subr.bf16.mxu0 0
        %1344 = vmatpush1.bf16.msra.mxu0 0
        %1345 = vmatprep.subr.bf16.mxu0 0
        %1346 = vmatpush1.bf16.msra.mxu0 0
        %1347 = vmatprep.subr.bf16.mxu0 0
        %1348 = vmatpush1.bf16.msra.mxu0 0
        %1349 = vmatprep.subr.bf16.mxu0 0
        %1350 = vmatpush1.bf16.msra.mxu0 0
        %1351 = vmatprep.subr.bf16.mxu0 0
        %1352 = vmatpush1.bf16.msra.mxu0 0
        %1353 = vmatprep.subr.bf16.mxu0 0
        %1354 = vmatpush1.bf16.msra.mxu0 0
        %1355 = vmatprep.subr.bf16.mxu0 0
        %1356 = vmatpush1.bf16.msra.mxu0 0
        %1357 = vmatprep.subr.bf16.mxu0 0
        %1358 = vmatpush1.bf16.msra.mxu0 %v1124
        %1359 = vmatprep.subr.bf16.mxu0 0
        %1360 = vmatpush2.bf16.msra.mxu0 0
        %1361 = vmatprep.subr.bf16.mxu0 0
        %1362 = vmatpush2.bf16.msra.mxu0 0
        %1363 = vmatprep.subr.bf16.mxu0 0
        %1364 = vmatpush2.bf16.msra.mxu0 0
        %1365 = vmatprep.subr.bf16.mxu0 0
        %1366 = vmatpush2.bf16.msra.mxu0 0
        %1367 = vmatprep.subr.bf16.mxu0 0
        %1368 = vmatpush2.bf16.msra.mxu0 0
        %1369 = vmatprep.subr.bf16.mxu0 0
        %1370 = vmatpush2.bf16.msra.mxu0 0
        %1371 = vmatprep.subr.bf16.mxu0 0
        %1372 = vmatpush2.bf16.msra.mxu0 0
        %1373 = vmatprep.subr.bf16.mxu0 0
        %1374 = vmatpush2.bf16.msra.mxu0 0
        %1375 = vmatprep.mubr.bf16.mxu0 0
        %1376 = vmatmul.mubr.bf16.gmra.mxu0 %v1341
        %v1377 = vpop.f32.mrf.mxu0
        %v1378 = vadd.f32 0.0, %v1377
        %v1379 = vpop.f32.mrf.mxu0
        %v1380 = vpop.f32.mrf.mxu0
        %v1381 = vadd.f32 0.0, %v1380
        %v1382 = vpop.f32.mrf.mxu0
        %1383 = vdwg.mxu0
        %v1384 = vpack.c.bf16 %v1337, %v1334
        %v1385 = vpack.c.bf16 %v1381, %v1378
        %v1386 = vld [vmem:[%s615] sm:$0xf]
        %v1387 = vld [vmem:[%s615 + $0x4] sm:$0xf]
        %v1388 = vld [vmem:[%s615 + $0x8] sm:$0xf]
        %v1389 = vld [vmem:[%s615 + $0xc] sm:$0xf]
        %v1390 = vld [vmem:[%s615 + $0x10] sm:$0xf]
        %v1391 = vld [vmem:[%s615 + $0x14] sm:$0xf]
        %v1392 = vld [vmem:[%s615 + $0x18] sm:$0xf]
        %v1393 = vld [vmem:[%s615 + $0x1c] sm:$0xf]
        %v1394 = vld [vmem:[%s615 + $0x20] sm:$0xf]
        %v1395 = vld [vmem:[%s615 + $0x24] sm:$0xf]
        %v1396 = vld [vmem:[%s615 + $0x28] sm:$0xf]
        %v1397 = vld [vmem:[%s615 + $0x2c] sm:$0xf]
        %v1398 = vld [vmem:[%s615 + $0x30] sm:$0xf]
        %v1399 = vld [vmem:[%s615 + $0x34] sm:$0xf]
        %v1400 = vld [vmem:[%s615 + $0x38] sm:$0xf]
        %v1401 = vld [vmem:[%s615 + $0x3c] sm:$0xf]
        %v1402 = vld [vmem:[%s728] sm:$0x1]
        %v1404 = vlaneseq
        %v1405 = vshrl.u32 %v1404, 7
        %v1406 = vsub.s32 0, %v1405
        %v1407 = vrot.slane %v1402, %v1406
        %v1425 = vunpack.c.l.b16 %v1386
        %v1426 = vunpack.c.l.b16 %v1387
        %v1427 = vunpack.c.l.b16 %v1388
        %v1428 = vunpack.c.l.b16 %v1389
        %v1429 = vunpack.c.l.b16 %v1390
        %v1430 = vunpack.c.l.b16 %v1391
        %v1431 = vunpack.c.l.b16 %v1392
        %v1432 = vunpack.c.l.b16 %v1393
        %v1433 = vunpack.c.l.b16 %v1394
        %v1434 = vunpack.c.l.b16 %v1395
        %v1435 = vunpack.c.l.b16 %v1396
        %v1436 = vunpack.c.l.b16 %v1397
        %v1437 = vunpack.c.l.b16 %v1398
        %v1438 = vunpack.c.l.b16 %v1399
        %v1439 = vunpack.c.l.b16 %v1400
        %v1440 = vunpack.c.l.b16 %v1401
        %v1441 = vpack.c.b16 %v1426, %v1425
        %v1442 = vpack.c.b16 %v1428, %v1427
        %v1443 = vpack.c.b16 %v1430, %v1429
        %v1444 = vpack.c.b16 %v1432, %v1431
        %v1445 = vpack.c.b16 %v1434, %v1433
        %v1446 = vpack.c.b16 %v1436, %v1435
        %v1447 = vpack.c.b16 %v1438, %v1437
        %v1448 = vpack.c.b16 %v1440, %v1439
        %1457 = vmatprep.subr.bf16.mxu0 0
        %1458 = vmatpush1.bf16.msra.mxu0 %v1448
        %1459 = vmatprep.subr.bf16.mxu0 0
        %1460 = vmatpush1.bf16.msra.mxu0 %v1447
        %1461 = vmatprep.subr.bf16.mxu0 0
        %1462 = vmatpush1.bf16.msra.mxu0 %v1446
        %1463 = vmatprep.subr.bf16.mxu0 0
        %1464 = vmatpush1.bf16.msra.mxu0 %v1445
        %1465 = vmatprep.subr.bf16.mxu0 0
        %1466 = vmatpush1.bf16.msra.mxu0 %v1444
        %1467 = vmatprep.subr.bf16.mxu0 0
        %1468 = vmatpush1.bf16.msra.mxu0 %v1443
        %1469 = vmatprep.subr.bf16.mxu0 0
        %1470 = vmatpush1.bf16.msra.mxu0 %v1442
        %1471 = vmatprep.subr.bf16.mxu0 0
        %1472 = vmatpush1.bf16.msra.mxu0 %v1441
        %1473 = vmatprep.subr.bf16.mxu0 0
        %1474 = vmatpush2.bf16.msra.mxu0 0
        %1475 = vmatprep.subr.bf16.mxu0 0
        %1476 = vmatpush2.bf16.msra.mxu0 0
        %1477 = vmatprep.subr.bf16.mxu0 0
        %1478 = vmatpush2.bf16.msra.mxu0 0
        %1479 = vmatprep.subr.bf16.mxu0 0
        %1480 = vmatpush2.bf16.msra.mxu0 0
        %1481 = vmatprep.subr.bf16.mxu0 0
        %1482 = vmatpush2.bf16.msra.mxu0 0
        %1483 = vmatprep.subr.bf16.mxu0 0
        %1484 = vmatpush2.bf16.msra.mxu0 0
        %1485 = vmatprep.subr.bf16.mxu0 0
        %1486 = vmatpush2.bf16.msra.mxu0 0
        %1487 = vmatprep.subr.bf16.mxu0 0
        %1488 = vmatpush2.bf16.msra.mxu0 0
        %1489 = vmatprep.mubr.bf16.mxu0 0
        %1490 = vmatmul.mubr.bf16.gmra.mxu0 %v1384
        %v1491 = vpop.f32.mrf.mxu0
        %v1492 = vadd.f32 %v1407, %v1491
        %v1493 = vpop.f32.mrf.mxu0
        %v1494 = vpop.f32.mrf.mxu0
        %v1495 = vadd.f32 %v1407, %v1494
        %v1496 = vpop.f32.mrf.mxu0
        %1497 = vmatprep.mubr.bf16.mxu0 0
        %1498 = vmatmul.mubr.bf16.gmra.mxu0 %v1385
        %v1499 = vpop.f32.mrf.mxu0
        %v1500 = vadd.f32 %v1407, %v1499
        %v1501 = vpop.f32.mrf.mxu0
        %v1502 = vpop.f32.mrf.mxu0
        %v1503 = vadd.f32 %v1407, %v1502
        %v1504 = vpop.f32.mrf.mxu0
        %1505 = vdwg.mxu0
        %v1506 = vadd.f32 %v1492, %v834
        %v1507 = vadd.f32 %v1495, %v835
        %v1508 = vadd.f32 %v1500, %v836
        %v1509 = vadd.f32 %v1503, %v837
        %v1510 = vld [vmem:[%s731] sm:$0x1]
        %v1511 = vld [vmem:[%s734] sm:$0x1]
        %1512 = vadd.xlane.f32.xlu0 %v1506
        %v1513 = vpop.xlane.xlu0 %1512
        %1514 = vadd.xlane.f32.xlu0 %v1507
        %v1515 = vpop.xlane.xlu0 %1514
        %1516 = vadd.xlane.f32.xlu0 %v1508
        %v1517 = vpop.xlane.xlu0 %1516
        %1518 = vadd.xlane.f32.xlu0 %v1509
        %v1519 = vpop.xlane.xlu0 %1518
        %v1520 = vmul.f32 %v1506, %v1506
        %v1521 = vmul.f32 %v1507, %v1507
        %v1522 = vmul.f32 %v1508, %v1508
        %v1523 = vmul.f32 %v1509, %v1509
        %1524 = vadd.xlane.f32.xlu0 %v1520
        %v1525 = vpop.xlane.xlu0 %1524
        %1526 = vadd.xlane.f32.xlu0 %v1521
        %v1527 = vpop.xlane.xlu0 %1526
        %1528 = vadd.xlane.f32.xlu0 %v1522
        %v1529 = vpop.xlane.xlu0 %1528
        %1530 = vadd.xlane.f32.xlu0 %v1523
        %v1531 = vpop.xlane.xlu0 %1530
        %v1532 = vmul.f32 %v1513, 0.03125
        %v1533 = vmul.f32 %v1515, 0.03125
        %v1534 = vmul.f32 %v1517, 0.03125
        %v1535 = vmul.f32 %v1519, 0.03125
        %v1536 = vmul.f32 %v1525, 0.03125
        %v1537 = vmul.f32 %v1527, 0.03125
        %v1538 = vmul.f32 %v1529, 0.03125
        %v1539 = vmul.f32 %v1531, 0.03125
        %v1540 = vmul.f32 %v1532, %v1532
        %v1541 = vmul.f32 %v1533, %v1533
        %v1542 = vmul.f32 %v1534, %v1534
        %v1543 = vmul.f32 %v1535, %v1535
        %v1544 = vsub.f32 %v1536, %v1540
        %v1545 = vsub.f32 %v1537, %v1541
        %v1546 = vsub.f32 %v1538, %v1542
        %v1547 = vsub.f32 %v1539, %v1543
        %v1548 = vadd.f32 %v1544, 1e-05
        %v1549 = vadd.f32 %v1545, 1e-05
        %v1550 = vadd.f32 %v1546, 1e-05
        %v1551 = vadd.f32 %v1547, 1e-05
        %v1552 = vrsqrt.pop %v1548
        %v1553 = vrsqrt.pop %v1549
        %v1554 = vrsqrt.pop %v1550
        %v1555 = vrsqrt.pop %v1551
        %v1556 = vsub.f32 %v1506, %v1532
        %v1557 = vsub.f32 %v1507, %v1533
        %v1558 = vsub.f32 %v1508, %v1534
        %v1559 = vsub.f32 %v1509, %v1535
        %v1560 = vmul.f32 %v1556, %v1552
        %v1561 = vmul.f32 %v1557, %v1553
        %v1562 = vmul.f32 %v1558, %v1554
        %v1563 = vmul.f32 %v1559, %v1555
        %v1565 = vlaneseq
        %v1566 = vshrl.u32 %v1565, 7
        %v1567 = vsub.s32 0, %v1566
        %v1568 = vrot.slane %v1510, %v1567
        %v1570 = vmul.f32 %v1560, %v1568
        %v1571 = vmul.f32 %v1561, %v1568
        %v1572 = vmul.f32 %v1562, %v1568
        %v1573 = vmul.f32 %v1563, %v1568
        %v1575 = vlaneseq
        %v1576 = vshrl.u32 %v1575, 7
        %v1577 = vsub.s32 0, %v1576
        %v1578 = vrot.slane %v1511, %v1577
        %v1580 = vadd.f32 %v1570, %v1578
        %v1581 = vadd.f32 %v1571, %v1578
        %v1582 = vadd.f32 %v1572, %v1578
        %v1583 = vadd.f32 %v1573, %v1578
        %v1584 = vpack.c.bf16 %v1581, %v1580
        %v1585 = vpack.c.bf16 %v1583, %v1582
        %v1586 = vld [vmem:[%s624] sm:$0xf]
        %v1587 = vld [vmem:[%s624 + $0x4] sm:$0xf]
        %v1588 = vld [vmem:[%s624 + $0x8] sm:$0xf]
        %v1589 = vld [vmem:[%s624 + $0xc] sm:$0xf]
        %v1590 = vld [vmem:[%s624 + $0x10] sm:$0xf]
        %v1591 = vld [vmem:[%s624 + $0x14] sm:$0xf]
        %v1592 = vld [vmem:[%s624 + $0x18] sm:$0xf]
        %v1593 = vld [vmem:[%s624 + $0x1c] sm:$0xf]
        %v1594 = vld [vmem:[%s624 + $0x20] sm:$0xf]
        %v1595 = vld [vmem:[%s624 + $0x24] sm:$0xf]
        %v1596 = vld [vmem:[%s624 + $0x28] sm:$0xf]
        %v1597 = vld [vmem:[%s624 + $0x2c] sm:$0xf]
        %v1598 = vld [vmem:[%s624 + $0x30] sm:$0xf]
        %v1599 = vld [vmem:[%s624 + $0x34] sm:$0xf]
        %v1600 = vld [vmem:[%s624 + $0x38] sm:$0xf]
        %v1601 = vld [vmem:[%s624 + $0x3c] sm:$0xf]
        %v1602 = vld [vmem:[%s737] sm:$0x1]
        %v1604 = vlaneseq
        %v1605 = vshrl.u32 %v1604, 7
        %v1606 = vsub.s32 0, %v1605
        %v1607 = vrot.slane %v1602, %v1606
        %v1625 = vunpack.c.l.b16 %v1586
        %v1626 = vunpack.c.l.b16 %v1587
        %v1627 = vunpack.c.l.b16 %v1588
        %v1628 = vunpack.c.l.b16 %v1589
        %v1629 = vunpack.c.l.b16 %v1590
        %v1630 = vunpack.c.l.b16 %v1591
        %v1631 = vunpack.c.l.b16 %v1592
        %v1632 = vunpack.c.l.b16 %v1593
        %v1633 = vunpack.c.l.b16 %v1594
        %v1634 = vunpack.c.l.b16 %v1595
        %v1635 = vunpack.c.l.b16 %v1596
        %v1636 = vunpack.c.l.b16 %v1597
        %v1637 = vunpack.c.l.b16 %v1598
        %v1638 = vunpack.c.l.b16 %v1599
        %v1639 = vunpack.c.l.b16 %v1600
        %v1640 = vunpack.c.l.b16 %v1601
        %v1641 = vpack.c.b16 %v1626, %v1625
        %v1642 = vpack.c.b16 %v1628, %v1627
        %v1643 = vpack.c.b16 %v1630, %v1629
        %v1644 = vpack.c.b16 %v1632, %v1631
        %v1645 = vpack.c.b16 %v1634, %v1633
        %v1646 = vpack.c.b16 %v1636, %v1635
        %v1647 = vpack.c.b16 %v1638, %v1637
        %v1648 = vpack.c.b16 %v1640, %v1639
        %1657 = vmatprep.subr.bf16.mxu0 0
        %1658 = vmatpush1.bf16.msra.mxu0 %v1648
        %1659 = vmatprep.subr.bf16.mxu0 0
        %1660 = vmatpush1.bf16.msra.mxu0 %v1647
        %1661 = vmatprep.subr.bf16.mxu0 0
        %1662 = vmatpush1.bf16.msra.mxu0 %v1646
        %1663 = vmatprep.subr.bf16.mxu0 0
        %1664 = vmatpush1.bf16.msra.mxu0 %v1645
        %1665 = vmatprep.subr.bf16.mxu0 0
        %1666 = vmatpush1.bf16.msra.mxu0 %v1644
        %1667 = vmatprep.subr.bf16.mxu0 0
        %1668 = vmatpush1.bf16.msra.mxu0 %v1643
        %1669 = vmatprep.subr.bf16.mxu0 0
        %1670 = vmatpush1.bf16.msra.mxu0 %v1642
        %1671 = vmatprep.subr.bf16.mxu0 0
        %1672 = vmatpush1.bf16.msra.mxu0 %v1641
        %1673 = vmatprep.subr.bf16.mxu0 0
        %1674 = vmatpush2.bf16.msra.mxu0 0
        %1675 = vmatprep.subr.bf16.mxu0 0
        %1676 = vmatpush2.bf16.msra.mxu0 0
        %1677 = vmatprep.subr.bf16.mxu0 0
        %1678 = vmatpush2.bf16.msra.mxu0 0
        %1679 = vmatprep.subr.bf16.mxu0 0
        %1680 = vmatpush2.bf16.msra.mxu0 0
        %1681 = vmatprep.subr.bf16.mxu0 0
        %1682 = vmatpush2.bf16.msra.mxu0 0
        %1683 = vmatprep.subr.bf16.mxu0 0
        %1684 = vmatpush2.bf16.msra.mxu0 0
        %1685 = vmatprep.subr.bf16.mxu0 0
        %1686 = vmatpush2.bf16.msra.mxu0 0
        %1687 = vmatprep.subr.bf16.mxu0 0
        %1688 = vmatpush2.bf16.msra.mxu0 0
        %1689 = vmatprep.mubr.bf16.mxu0 0
        %1690 = vmatmul.mubr.bf16.gmra.mxu0 %v1584
        %v1691 = vpop.f32.mrf.mxu0
        %v1692 = vadd.f32 %v1607, %v1691
        %v1693 = vpop.f32.mrf.mxu0
        %v1694 = vpop.f32.mrf.mxu0
        %v1695 = vadd.f32 %v1607, %v1694
        %v1696 = vpop.f32.mrf.mxu0
        %1697 = vmatprep.mubr.bf16.mxu0 0
        %1698 = vmatmul.mubr.bf16.gmra.mxu0 %v1585
        %v1699 = vpop.f32.mrf.mxu0
        %v1700 = vadd.f32 %v1607, %v1699
        %v1701 = vpop.f32.mrf.mxu0
        %v1702 = vpop.f32.mrf.mxu0
        %v1703 = vadd.f32 %v1607, %v1702
        %v1704 = vpop.f32.mrf.mxu0
        %1705 = vdwg.mxu0
        %v1706 = vmul.f32 %v1692, %v1692
        %v1707 = vmul.f32 %v1695, %v1695
        %v1708 = vmul.f32 %v1700, %v1700
        %v1709 = vmul.f32 %v1703, %v1703
        %v1710 = vmul.f32 %v1692, %v1706
        %v1711 = vmul.f32 %v1695, %v1707
        %v1712 = vmul.f32 %v1700, %v1708
        %v1713 = vmul.f32 %v1703, %v1709
        %v1714 = vmul.f32 %v1710, 0.044715
        %v1715 = vmul.f32 %v1711, 0.044715
        %v1716 = vmul.f32 %v1712, 0.044715
        %v1717 = vmul.f32 %v1713, 0.044715
        %v1718 = vadd.f32 %v1692, %v1714
        %v1719 = vadd.f32 %v1695, %v1715
        %v1720 = vadd.f32 %v1700, %v1716
        %v1721 = vadd.f32 %v1703, %v1717
        %v1722 = vmul.f32 %v1718, 0.7978846
        %v1723 = vmul.f32 %v1719, 0.7978846
        %v1724 = vmul.f32 %v1720, 0.7978846
        %v1725 = vmul.f32 %v1721, 0.7978846
        %v1726 = vtanh.pop %v1722
        %v1727 = vtanh.pop %v1723
        %v1728 = vtanh.pop %v1724
        %v1729 = vtanh.pop %v1725
        %v1730 = vadd.f32 %v1726, 1.0
        %v1731 = vadd.f32 %v1727, 1.0
        %v1732 = vadd.f32 %v1728, 1.0
        %v1733 = vadd.f32 %v1729, 1.0
        %v1734 = vmul.f32 %v1730, 0.5
        %v1735 = vmul.f32 %v1731, 0.5
        %v1736 = vmul.f32 %v1732, 0.5
        %v1737 = vmul.f32 %v1733, 0.5
        %v1738 = vmul.f32 %v1692, %v1734
        %v1739 = vmul.f32 %v1695, %v1735
        %v1740 = vmul.f32 %v1700, %v1736
        %v1741 = vmul.f32 %v1703, %v1737
        %v1742 = vpack.c.bf16 %v1739, %v1738
        %v1743 = vpack.c.bf16 %v1741, %v1740
        %v1744 = vld [vmem:[%s633] sm:$0xf]
        %v1745 = vld [vmem:[%s633 + $0x4] sm:$0xf]
        %v1746 = vld [vmem:[%s633 + $0x8] sm:$0xf]
        %v1747 = vld [vmem:[%s633 + $0xc] sm:$0xf]
        %v1748 = vld [vmem:[%s633 + $0x10] sm:$0xf]
        %v1749 = vld [vmem:[%s633 + $0x14] sm:$0xf]
        %v1750 = vld [vmem:[%s633 + $0x18] sm:$0xf]
        %v1751 = vld [vmem:[%s633 + $0x1c] sm:$0xf]
        %v1752 = vld [vmem:[%s633 + $0x20] sm:$0xf]
        %v1753 = vld [vmem:[%s633 + $0x24] sm:$0xf]
        %v1754 = vld [vmem:[%s633 + $0x28] sm:$0xf]
        %v1755 = vld [vmem:[%s633 + $0x2c] sm:$0xf]
        %v1756 = vld [vmem:[%s633 + $0x30] sm:$0xf]
        %v1757 = vld [vmem:[%s633 + $0x34] sm:$0xf]
        %v1758 = vld [vmem:[%s633 + $0x38] sm:$0xf]
        %v1759 = vld [vmem:[%s633 + $0x3c] sm:$0xf]
        %v1760 = vld [vmem:[%s740] sm:$0x1]
        %v1762 = vlaneseq
        %v1763 = vshrl.u32 %v1762, 7
        %v1764 = vsub.s32 0, %v1763
        %v1765 = vrot.slane %v1760, %v1764
        %v1783 = vunpack.c.l.b16 %v1744
        %v1784 = vunpack.c.l.b16 %v1745
        %v1785 = vunpack.c.l.b16 %v1746
        %v1786 = vunpack.c.l.b16 %v1747
        %v1787 = vunpack.c.l.b16 %v1748
        %v1788 = vunpack.c.l.b16 %v1749
        %v1789 = vunpack.c.l.b16 %v1750
        %v1790 = vunpack.c.l.b16 %v1751
        %v1791 = vunpack.c.l.b16 %v1752
        %v1792 = vunpack.c.l.b16 %v1753
        %v1793 = vunpack.c.l.b16 %v1754
        %v1794 = vunpack.c.l.b16 %v1755
        %v1795 = vunpack.c.l.b16 %v1756
        %v1796 = vunpack.c.l.b16 %v1757
        %v1797 = vunpack.c.l.b16 %v1758
        %v1798 = vunpack.c.l.b16 %v1759
        %v1799 = vpack.c.b16 %v1784, %v1783
        %v1800 = vpack.c.b16 %v1786, %v1785
        %v1801 = vpack.c.b16 %v1788, %v1787
        %v1802 = vpack.c.b16 %v1790, %v1789
        %v1803 = vpack.c.b16 %v1792, %v1791
        %v1804 = vpack.c.b16 %v1794, %v1793
        %v1805 = vpack.c.b16 %v1796, %v1795
        %v1806 = vpack.c.b16 %v1798, %v1797
        %1815 = vmatprep.subr.bf16.mxu0 0
        %1816 = vmatpush1.bf16.msra.mxu0 %v1806
        %1817 = vmatprep.subr.bf16.mxu0 0
        %1818 = vmatpush1.bf16.msra.mxu0 %v1805
        %1819 = vmatprep.subr.bf16.mxu0 0
        %1820 = vmatpush1.bf16.msra.mxu0 %v1804
        %1821 = vmatprep.subr.bf16.mxu0 0
        %1822 = vmatpush1.bf16.msra.mxu0 %v1803
        %1823 = vmatprep.subr.bf16.mxu0 0
        %1824 = vmatpush1.bf16.msra.mxu0 %v1802
        %1825 = vmatprep.subr.bf16.mxu0 0
        %1826 = vmatpush1.bf16.msra.mxu0 %v1801
        %1827 = vmatprep.subr.bf16.mxu0 0
        %1828 = vmatpush1.bf16.msra.mxu0 %v1800
        %1829 = vmatprep.subr.bf16.mxu0 0
        %1830 = vmatpush1.bf16.msra.mxu0 %v1799
        %1831 = vmatprep.subr.bf16.mxu0 0
        %1832 = vmatpush2.bf16.msra.mxu0 0
        %1833 = vmatprep.subr.bf16.mxu0 0
        %1834 = vmatpush2.bf16.msra.mxu0 0
        %1835 = vmatprep.subr.bf16.mxu0 0
        %1836 = vmatpush2.bf16.msra.mxu0 0
        %1837 = vmatprep.subr.bf16.mxu0 0
        %1838 = vmatpush2.bf16.msra.mxu0 0
        %1839 = vmatprep.subr.bf16.mxu0 0
        %1840 = vmatpush2.bf16.msra.mxu0 0
        %1841 = vmatprep.subr.bf16.mxu0 0
        %1842 = vmatpush2.bf16.msra.mxu0 0
        %1843 = vmatprep.subr.bf16.mxu0 0
        %1844 = vmatpush2.bf16.msra.mxu0 0
        %1845 = vmatprep.subr.bf16.mxu0 0
        %1846 = vmatpush2.bf16.msra.mxu0 0
        %1847 = vmatprep.mubr.bf16.mxu0 0
        %1848 = vmatmul.mubr.bf16.gmra.mxu0 %v1742
        %v1849 = vpop.f32.mrf.mxu0
        %v1850 = vadd.f32 %v1765, %v1849
        %v1851 = vpop.f32.mrf.mxu0
        %v1852 = vpop.f32.mrf.mxu0
        %v1853 = vadd.f32 %v1765, %v1852
        %v1854 = vpop.f32.mrf.mxu0
        %1855 = vmatprep.mubr.bf16.mxu0 0
        %1856 = vmatmul.mubr.bf16.gmra.mxu0 %v1743
        %v1857 = vpop.f32.mrf.mxu0
        %v1858 = vadd.f32 %v1765, %v1857
        %v1859 = vpop.f32.mrf.mxu0
        %v1860 = vpop.f32.mrf.mxu0
        %v1861 = vadd.f32 %v1765, %v1860
        %v1862 = vpop.f32.mrf.mxu0
        %1863 = vdwg.mxu0
        %v1864 = vadd.f32 %v1850, %v1580
        %v1865 = vadd.f32 %v1853, %v1581
        %v1866 = vadd.f32 %v1858, %v1582
        %v1867 = vadd.f32 %v1861, %v1583
        %v1868 = vld [vmem:[%s743] sm:$0x1]
        %v1869 = vld [vmem:[%s746] sm:$0x1]
        %1870 = vadd.xlane.f32.xlu0 %v1864
        %v1871 = vpop.xlane.xlu0 %1870
        %1872 = vadd.xlane.f32.xlu0 %v1865
        %v1873 = vpop.xlane.xlu0 %1872
        %1874 = vadd.xlane.f32.xlu0 %v1866
        %v1875 = vpop.xlane.xlu0 %1874
        %1876 = vadd.xlane.f32.xlu0 %v1867
        %v1877 = vpop.xlane.xlu0 %1876
        %v1878 = vmul.f32 %v1864, %v1864
        %v1879 = vmul.f32 %v1865, %v1865
        %v1880 = vmul.f32 %v1866, %v1866
        %v1881 = vmul.f32 %v1867, %v1867
        %1882 = vadd.xlane.f32.xlu0 %v1878
        %v1883 = vpop.xlane.xlu0 %1882
        %1884 = vadd.xlane.f32.xlu0 %v1879
        %v1885 = vpop.xlane.xlu0 %1884
        %1886 = vadd.xlane.f32.xlu0 %v1880
        %v1887 = vpop.xlane.xlu0 %1886
        %1888 = vadd.xlane.f32.xlu0 %v1881
        %v1889 = vpop.xlane.xlu0 %1888
        %v1890 = vmul.f32 %v1871, 0.03125
        %v1891 = vmul.f32 %v1873, 0.03125
        %v1892 = vmul.f32 %v1875, 0.03125
        %v1893 = vmul.f32 %v1877, 0.03125
        %v1894 = vmul.f32 %v1883, 0.03125
        %v1895 = vmul.f32 %v1885, 0.03125
        %v1896 = vmul.f32 %v1887, 0.03125
        %v1897 = vmul.f32 %v1889, 0.03125
        %v1898 = vmul.f32 %v1890, %v1890
        %v1899 = vmul.f32 %v1891, %v1891
        %v1900 = vmul.f32 %v1892, %v1892
        %v1901 = vmul.f32 %v1893, %v1893
        %v1902 = vsub.f32 %v1894, %v1898
        %v1903 = vsub.f32 %v1895, %v1899
        %v1904 = vsub.f32 %v1896, %v1900
        %v1905 = vsub.f32 %v1897, %v1901
        %v1906 = vadd.f32 %v1902, 1e-05
        %v1907 = vadd.f32 %v1903, 1e-05
        %v1908 = vadd.f32 %v1904, 1e-05
        %v1909 = vadd.f32 %v1905, 1e-05
        %v1910 = vrsqrt.pop %v1906
        %v1911 = vrsqrt.pop %v1907
        %v1912 = vrsqrt.pop %v1908
        %v1913 = vrsqrt.pop %v1909
        %v1914 = vsub.f32 %v1864, %v1890
        %v1915 = vsub.f32 %v1865, %v1891
        %v1916 = vsub.f32 %v1866, %v1892
        %v1917 = vsub.f32 %v1867, %v1893
        %v1918 = vmul.f32 %v1914, %v1910
        %v1919 = vmul.f32 %v1915, %v1911
        %v1920 = vmul.f32 %v1916, %v1912
        %v1921 = vmul.f32 %v1917, %v1913
        %v1923 = vlaneseq
        %v1924 = vshrl.u32 %v1923, 7
        %v1925 = vsub.s32 0, %v1924
        %v1926 = vrot.slane %v1868, %v1925
        %v1928 = vmul.f32 %v1918, %v1926
        %v1929 = vmul.f32 %v1919, %v1926
        %v1930 = vmul.f32 %v1920, %v1926
        %v1931 = vmul.f32 %v1921, %v1926
        %v1933 = vlaneseq
        %v1934 = vshrl.u32 %v1933, 7
        %v1935 = vsub.s32 0, %v1934
        %v1936 = vrot.slane %v1869, %v1935
        %v1938 = vadd.f32 %v1928, %v1936
        %v1939 = vadd.f32 %v1929, %v1936
        %v1940 = vadd.f32 %v1930, %v1936
        %v1941 = vadd.f32 %v1931, %v1936
        %1942 = vst [vmem:[#allocation2] sm:$0xff] %v1938
        %1943 = vst [vmem:[#allocation2 + $0x8] sm:$0xff] %v1939
        %1944 = vst [vmem:[#allocation2 + $0x10] sm:$0xff] %v1940
        %1945 = vst [vmem:[#allocation2 + $0x18] sm:$0xff] %v1941
        %p1946 = scmp.eq.s32.totalorder %s41, 1
        // Predicated region
        $region101: #{_encoder_forward.1} parent=83 // pred_check
          %p1947 = pneg %p1946
        $region102: #{_encoder_forward.1} parent=83 // pred_check_branch
          %1949 = sbr.rel (%p1947) target = $region104
        $region103: #{_encoder_forward.1} parent=83 // pred_region
          loop: start=0, step=1, limit=32
          $region105: #{_encoder_forward.1} parent=103 // loop_pre_header
            _
          $region106: #{_encoder_forward.1} parent=103 // loop_header
            %s1951 = sphi 0, %s1955
            %p1952 = scmp.ge.s32.totalorder %s1951, 32
          $region107: #{_encoder_forward.1} parent=103 // loop_header_branch
            %1954 = sbr.rel (%p1952) target = $region111
          $region108: #{_encoder_forward.1} parent=103 // loop_body
            %s1956 = sld [smem:[#allocation4 + %s1951]]
            %s1957 = scalar_lea.vmem [#allocation2], %s1956
            %v1958 = vld [vmem:[%s1957] sm:$0x1]
            %s1959 = scalar_lea.vmem [#allocation11], %s1951
            %1960 = vst [vmem:[%s1959] sm:$0x1] %v1958
          $region109: #{_encoder_forward.1} parent=103 // loop_footer
            %s1955 = sadd.s32 1, %s1951
          $region110: #{_encoder_forward.1} parent=103 // loop_footer_branch
            %1950 = sbr.rel target = $region106
          $region111: #{_encoder_forward.1} parent=103 // loop_exit
            _
        $region104: #{_encoder_forward.1} parent=83 // pred_fallthru
          _
        // Predicated region
        $region112: #{_encoder_forward.1} parent=83 // pred_check
          %p1961 = pneg %p450
        $region113: #{_encoder_forward.1} parent=83 // pred_check_branch
          %1963 = sbr.rel (%p1961) target = $region115
        $region114: #{_encoder_forward.1} parent=83 // pred_region
          %s1965 = ssub.s32 512, 512
          %1966 = vsyncadd [#allocation7], %s1965
          %s1967 = sshll.u32 [#allocation11], 4
          %s1968 = int_to_ptr.vmem [resolvable:$true] %s1967
          %1973 = dma.vmem_to_hbm [thread:$0]  %s1968, 512, %s17, [#allocation7], 128, 128, 8
        $region115: #{_encoder_forward.1} parent=83 // pred_fallthru
          _
        // Predicated region
        $region116: #{_encoder_forward.1} parent=83 // pred_check
          %p1974 = pneg %p450
        $region117: #{_encoder_forward.1} parent=83 // pred_check_branch
          %1976 = sbr.rel (%p1974) target = $region119
        $region118: #{_encoder_forward.1} parent=83 // pred_region
          %1977 = dma.done [#allocation7], 512
        $region119: #{_encoder_forward.1} parent=83 // pred_fallthru
          _
      $region84: #{_encoder_forward.1} parent=5 // pred_fallthru
        _
      %p1978 = scmp.le.s32.totalorder 2, %s36
      // Predicated region
      $region120: #{_encoder_forward.1} parent=5 // pred_check
        %p1979 = pneg %p1978
      $region121: #{_encoder_forward.1} parent=5 // pred_check_branch
        %1981 = sbr.rel (%p1979) target = $region123
      $region122: #{_encoder_forward.1} parent=5 // pred_region
        %s1982 = ssub.s32 %s36, 2
      $region123: #{_encoder_forward.1} parent=5 // pred_fallthru
        _
    $region6: #{_encoder_forward.1} parent=1 // loop_footer
      %s40 = sadd.s32 1, %s36
    $region7: #{_encoder_forward.1} parent=1 // loop_footer_branch
      %35 = sbr.rel target = $region3
    $region8: #{_encoder_forward.1} parent=1 // loop_exit
      _
    %1983 = vsyncpa [#allocation6], 1
    %s1984 = scalar_lea.sflag [#allocation6], 1
    %1985 = vsyncpa %s1984, 1
    %1986 = vsyncpa [#allocation9], 1
    %s1987 = scalar_lea.sflag [#allocation9], 1
    %1988 = vsyncpa %s1987, 1
    %1989 = vsyncpa [#allocation7], 1
    %s1990 = scalar_lea.sflag [#allocation7], 1
    %1991 = vsyncpa %s1990, 1

</llo_original>
